<compile_context>
chip_gen: v6e
topology: v6e:2x2x1
jax: 0.10.0
libtpu: 0.0.40
codegen_flags: <defaults>
</compile_context>

<pallas_src>
import functools

import jax
import jax.numpy as jnp
from jax.experimental import pallas as pl
from jax.experimental.pallas import tpu as pltpu


# ----------------------------- Pallas kernel -------------------------------- #
def _skm2d_kernel(H, W, C, Bt, KS,
                  x_ref,                     # (Bt, H+KMAX-1, (W+KMAX-1)*C) padded, repeated, lane-dense
                  w3_ref, b3_ref,            # (9*H,  W*C) taps (BN folded, H-broadcast), (H, W*C) bias
                  w5_ref, b5_ref,            # (25*H, W*C), (H, W*C)
                  w1_ref, b1_ref,            # fc1 lane-tiled + GAP fold: (W*C, D), (1, D)
                  w2_ref, b2_ref,            # fc2 lane-tiled: (D, M*W*C), (1, M*W*C)
                  o_ref,                     # output block (Bt, H, W*C)
                  cols_ref,                  # VMEM scratch (KMAX, H+KMAX-1, W*C)
                  vout_ref):                 # VMEM scratch (Bt, M, H, W*C) branch outputs
    M = len(KS)
    k3, k5 = KS
    KMAX = k5
    off = (KMAX - k3) // 2
    WC = W * C
    inv_hw = 1.0 / float(H * W)

    s_rows = []      # per-sample (1, WC) sums over H of (out3 + out5)
    for b in range(Bt):
        xr = x_ref[b]                                     # (Hp, Wp*C)

        # Stage the KMAX lane-shifted slabs once: the ONLY cross-lane work.
        # Everything downstream reads lane-aligned sublane windows of these.
        for dx in range(KMAX):
            cols_ref[dx] = xr[:, dx * C: dx * C + WC]     # (Hp, WC)

        acc3 = None
        acc5 = None
        # Single fused 5x5 sweep; the 3x3 branch reuses the interior windows.
        for dy in range(KMAX):
            for dx in range(KMAX):
                rw = cols_ref[dx, dy:dy + H, :]           # (H, WC)  plain vld
                i5 = dy * k5 + dx
                t5 = w5_ref[i5 * H:(i5 + 1) * H, :]       # pre-broadcast tap, vld
                c5 = rw * t5
                acc5 = c5 if acc5 is None else acc5 + c5
                if off <= dy < off + k3 and off <= dx < off + k3:
                    i3 = (dy - off) * k3 + (dx - off)
                    t3 = w3_ref[i3 * H:(i3 + 1) * H, :]
                    c3 = rw * t3
                    acc3 = c3 if acc3 is None else acc3 + c3

        out3 = jnp.maximum(acc3 + b3_ref[...], 0.0)       # (H, WC)  (BN scale in taps)
        out5 = jnp.maximum(acc5 + b5_ref[...], 0.0)
        vout_ref[b, 0] = out3                             # branch order follows KS=(3,5)
        vout_ref[b, 1] = out5
        s_rows.append(jnp.sum(out3 + out5, axis=0, keepdims=True))   # (1, WC)

    S = s_rows[0] if Bt == 1 else jnp.concatenate(s_rows, axis=0)    # (Bt, WC)
    Su = S * inv_hw                                       # lane-resident partial means

    # --- SK attention, batched over the block ---
    # fc1 with the GAP W-fold absorbed into the lane-tiled weight (MXU does the
    # fold); then fc2 (lane-tiled) and a per-lane softmax across the M chunks.
    z = jnp.maximum(
        jnp.dot(Su, w1_ref[...], preferred_element_type=jnp.float32) + b1_ref[...],
        0.0)                                                          # (Bt, D)
    a = jnp.dot(z, w2_ref[...], preferred_element_type=jnp.float32) + b2_ref[...]
    chunks = [a[:, m * WC:(m + 1) * WC] for m in range(M)]            # lane-dense
    mx = chunks[0]
    for cc in chunks[1:]:
        mx = jnp.maximum(mx, cc)
    es = [jnp.exp(cc - mx) for cc in chunks]
    den = es[0]
    for e in es[1:]:
        den = den + e
    inv = 1.0 / den
    atts = [e * inv for e in es]                                      # each (Bt, WC)

    # --- weighted sum of branch outputs (read back from VMEM scratch) ---
    for b in range(Bt):
        V = vout_ref[b, 0] * atts[0][b:b + 1, :]
        for m in range(1, M):
            V = V + vout_ref[b, m] * atts[m][b:b + 1, :]
        o_ref[b] = V


# ----------------------------- wrapper / glue -------------------------------- #
def skm2d_forward(x_nchw, params, kernels=(3, 5), batch_block=1):
    """x_nchw: (B, Cin, H, W) float32.  Returns (B, Cout, H, W)."""
    ks = tuple(kernels)
    assert len(ks) == 2 and ks == (3, 5), "kernel is specialized to kernels=(3,5)"
    B, Cin, H, W = x_nchw.shape
    C = params["w_conv"][0].shape[-1]      # out_channel
    D = params["w1"].shape[1]              # eff_d
    M = len(ks)
    KMAX = max(ks)
    pad = KMAX // 2
    assert C % Cin == 0, "grouped conv requires out_channel % in_channel == 0"
    mult = C // Cin
    WC = W * C
    Bt = batch_block
    assert B % Bt == 0

    # TODO(synk): these relayout passes (transpose/pad/repeat) are the largest
    # remaining end-to-end lever at scale (esp. v5e HBM); kept wrapper-side here.
    x = jnp.transpose(x_nchw, (0, 2, 3, 1)).astype(jnp.float32)       # NHWC
    xp = jnp.pad(x, ((0, 0), (pad, pad), (pad, pad), (0, 0)))         # single (max-kernel) pad
    xr = jnp.repeat(xp, mult, axis=3)                                 # grouped conv -> depthwise over C
    Hp, Wp = H + 2 * pad, W + 2 * pad
    x2d = xr.reshape(B, Hp, Wp * C)                                   # lane-dense slabs

    # --- fold BN scale into the conv taps; tile taps/biases lane-dense over (W,C)
    #     and pre-broadcast over H so in-kernel tap fetch is a pure vld ---
    w_t, b_t = [], []
    for bi, k in enumerate(ks):
        wf = params["w_conv"][bi] * params["scale"][bi][None, :]      # (k*k, C)
        w_t.append(jnp.broadcast_to(wf[:, None, None, :], (k * k, H, W, C))
                   .reshape(k * k * H, WC))
        b_t.append(jnp.broadcast_to(params["bias"][bi][None, None, :], (H, W, C))
                   .reshape(H, WC))

    # fc1 lane-tiled so the global-average-pool W-fold happens inside the matmul:
    #   z = relu((S / (H*W)) @ w1_tiled + b1),  w1_tiled[w*C + c, d] = w1[c, d]
    w1t = jnp.broadcast_to(params["w1"][None, :, :], (W, C, D)).reshape(WC, D)
    b1 = params["b1"]
    w2r = params["w2"].reshape(D, M, C)
    w2t = jnp.broadcast_to(w2r[:, :, None, :], (D, M, W, C)).reshape(D, M * WC)
    b2r = params["b2"].reshape(1, M, C)
    b2t = jnp.broadcast_to(b2r[:, :, None, :], (1, M, W, C)).reshape(1, M * WC)

    kernel = functools.partial(_skm2d_kernel, H, W, C, Bt, ks)

    out2d = pl.pallas_call(
        kernel,
        out_shape=jax.ShapeDtypeStruct((B, H, WC), jnp.float32),
        grid=(B // Bt,),
        in_specs=[
            pl.BlockSpec((Bt, Hp, Wp * C), lambda i: (i, 0, 0)),
            pl.BlockSpec((ks[0] * ks[0] * H, WC), lambda i: (0, 0)),
            pl.BlockSpec((H, WC), lambda i: (0, 0)),
            pl.BlockSpec((ks[1] * ks[1] * H, WC), lambda i: (0, 0)),
            pl.BlockSpec((H, WC), lambda i: (0, 0)),
            pl.BlockSpec((WC, D), lambda i: (0, 0)),
            pl.BlockSpec((1, D), lambda i: (0, 0)),
            pl.BlockSpec((D, M * WC), lambda i: (0, 0)),
            pl.BlockSpec((1, M * WC), lambda i: (0, 0)),
        ],
        out_specs=pl.BlockSpec((Bt, H, WC), lambda i: (i, 0, 0)),
        scratch_shapes=[
            pltpu.VMEM((KMAX, Hp, WC), jnp.float32),      # lane-aligned shifted slabs
            pltpu.VMEM((Bt, M, H, WC), jnp.float32),      # branch outputs
        ],
        compiler_params=pltpu.CompilerParams(
            dimension_semantics=("parallel",),
            vmem_limit_bytes=4 * 1024 * 1024),            # ~1 MB footprint + headroom
    )(x2d, w_t[0], b_t[0], w_t[1], b_t[1], w1t, b1, w2t, b2t)

    out = out2d.reshape(B, H, W, C)
    return jnp.transpose(out, (0, 3, 1, 2))                           # back to NCHW


# --------------------------- parameter construction -------------------------- #
def init_params(key, in_ch, out_ch, kernels=(3, 5), reduction_rate=16):
    eff_d = int(max(out_ch / reduction_rate, 32))
    M = len(kernels)
    keys = jax.random.split(key, 4 * M + 4)
    ki = iter(range(len(keys)))

    w_conv, scale, bias = [], [], []
    eps = 1e-5
    for k in kernels:
        w = 0.1 * jax.random.normal(keys[next(ki)], (k * k, out_ch), jnp.float32)
        cb = 0.1 * jax.random.normal(keys[next(ki)], (out_ch,), jnp.float32)
        gamma = 1.0 + 0.1 * jax.random.normal(keys[next(ki)], (out_ch,), jnp.float32)
        beta = 0.1 * jax.random.normal(keys[next(ki)], (out_ch,), jnp.float32)
        # fold conv-bias + BN (running_mean=0, running_var=1) into per-channel affine
        sc = gamma / jnp.sqrt(1.0 + eps)
        bs = beta + sc * cb
        w_conv.append(w)
        scale.append(sc)
        bias.append(bs)

    w1 = 0.1 * jax.random.normal(keys[next(ki)], (out_ch, eff_d), jnp.float32)
    b1 = 0.1 * jax.random.normal(keys[next(ki)], (1, eff_d), jnp.float32)
    w2 = 0.1 * jax.random.normal(keys[next(ki)], (eff_d, M * out_ch), jnp.float32)
    b2 = 0.1 * jax.random.normal(keys[next(ki)], (1, M * out_ch), jnp.float32)

    return dict(w_conv=w_conv, scale=scale, bias=bias, w1=w1, b1=b1, w2=w2, b2=b2)


# --------------------------- pure-JAX reference ------------------------------ #
def ref_forward(x_nchw, params, kernels=(3, 5)):
    B, Cin, H, W = x_nchw.shape
    C = params["w_conv"][0].shape[-1]
    M = len(kernels)
    x = jnp.transpose(x_nchw, (0, 2, 3, 1)).astype(jnp.float32)
    xrep = jnp.repeat(x, C // Cin, axis=3)
    outs = []
    for bi, k in enumerate(kernels):
        p = k // 2
        xp = jnp.pad(xrep, ((0, 0), (p, p), (p, p), (0, 0)))
        wt = params["w_conv"][bi]                       # (k*k, C)
        acc = jnp.zeros((B, H, W, C), jnp.float32)
        for dy in range(k):
            for dx in range(k):
                acc = acc + xp[:, dy:dy + H, dx:dx + W, :] * wt[dy * k + dx][None, None, None, :]
        outs.append(jax.nn.relu(acc * params["scale"][bi] + params["bias"][bi]))
    U = outs[0]
    for o in outs[1:]:
        U = U + o
    u = jnp.mean(U, axis=(1, 2))                        # (B, C)
    z = jax.nn.relu(u @ params["w1"] + params["b1"])    # (B, D)
    a = z @ params["w2"] + params["b2"]                 # (B, M*C)
    a = jax.nn.softmax(a.reshape(B, M, C), axis=1)
    V = jnp.zeros((B, H, W, C), jnp.float32)
    for m in range(M):
        V = V + outs[m] * a[:, m][:, None, None, :]
    return jnp.transpose(V, (0, 3, 1, 2))


# ------------------------------------ main ----------------------------------- #
if __name__ == "__main__":
    B, Cin, Cout, H, W = 2, 4, 8, 16, 16        # W*Cout = 128 -> fully lane-dense slabs
    key = jax.random.PRNGKey(0)
    kx, kp = jax.random.split(key)
    x = jax.random.normal(kx, (B, Cin, H, W), jnp.float32)
    params = init_params(kp, Cin, Cout, kernels=(3, 5), reduction_rate=16)

    y = skm2d_forward(x, params, kernels=(3, 5), batch_block=1)   # grid=(2,): both v7x TCs busy
    y = jax.block_until_ready(y)

    y_ref = jax.block_until_ready(ref_forward(x, params))
    assert y.shape == (B, Cout, H, W)
    assert jnp.allclose(y, y_ref, rtol=1e-4, atol=1e-4), "mismatch vs JAX reference"

    print("KERNEL_OK")
</pallas_src>

<mosaic_0001>
module attributes {stable_mosaic.version = 11 : i64} {
  func.func @_skm2d_kernel(%arg0: i32, %arg1: memref<1x20x160xf32, #tpu.memory_space<vmem>>, %arg2: memref<144x128xf32, #tpu.memory_space<vmem>>, %arg3: memref<16x128xf32, #tpu.memory_space<vmem>>, %arg4: memref<400x128xf32, #tpu.memory_space<vmem>>, %arg5: memref<16x128xf32, #tpu.memory_space<vmem>>, %arg6: memref<128x32xf32, #tpu.memory_space<vmem>>, %arg7: memref<1x32xf32, #tpu.memory_space<vmem>>, %arg8: memref<32x256xf32, #tpu.memory_space<vmem>>, %arg9: memref<1x256xf32, #tpu.memory_space<vmem>>, %arg10: memref<1x16x128xf32, #tpu.memory_space<vmem>>, %arg11: memref<5x20x128xf32, #tpu.memory_space<vmem>>, %arg12: memref<1x2x16x128xf32, #tpu.memory_space<vmem>>) attributes {dimension_semantics = [#tpu.dimension_semantics<parallel>], iteration_bounds = array<i64: 2>, scalar_prefetch = 0 : i64, scratch_operands = 2 : i64, tpu.core_type = #tpu.core_type<tc>, window_params = [{transform_indices = @transform_0, window_bounds = array<i64: 1, 20, 160>}, {pipeline_mode = #tpu.pipeline_mode<synchronous>, transform_indices = @transform_1, window_bounds = array<i64: 144, 128>}, {pipeline_mode = #tpu.pipeline_mode<synchronous>, transform_indices = @transform_2, window_bounds = array<i64: 16, 128>}, {pipeline_mode = #tpu.pipeline_mode<synchronous>, transform_indices = @transform_3, window_bounds = array<i64: 400, 128>}, {pipeline_mode = #tpu.pipeline_mode<synchronous>, transform_indices = @transform_4, window_bounds = array<i64: 16, 128>}, {pipeline_mode = #tpu.pipeline_mode<synchronous>, transform_indices = @transform_5, window_bounds = array<i64: 128, 32>}, {pipeline_mode = #tpu.pipeline_mode<synchronous>, transform_indices = @transform_6, window_bounds = array<i64: 1, 32>}, {pipeline_mode = #tpu.pipeline_mode<synchronous>, transform_indices = @transform_7, window_bounds = array<i64: 32, 256>}, {pipeline_mode = #tpu.pipeline_mode<synchronous>, transform_indices = @transform_8, window_bounds = array<i64: 1, 256>}, {transform_indices = @transform_9, window_bounds = array<i64: 1, 16, 128>}]} {
    %c0 = arith.constant 0 : index
    %c0_0 = arith.constant 0 : index
    %c0_1 = arith.constant 0 : index
    %0 = vector.load %arg1[%c0, %c0_0, %c0_1] : memref<1x20x160xf32, #tpu.memory_space<vmem>>, vector<1x20x160xf32>
    %1 = vector.shape_cast %0 : vector<1x20x160xf32> to vector<20x160xf32>
    %2 = vector.extract_strided_slice %1 {offsets = [0, 0], sizes = [20, 128], strides = [1, 1]} : vector<20x160xf32> to vector<20x128xf32>
    %c0_2 = arith.constant 0 : index
    %c0_3 = arith.constant 0 : index
    %c0_4 = arith.constant 0 : index
    %3 = vector.load %arg11[%c0_2, %c0_3, %c0_4] : memref<5x20x128xf32, #tpu.memory_space<vmem>>, vector<1x20x128xf32>
    %4 = vector.shape_cast %3 : vector<1x20x128xf32> to vector<20x128xf32>
    %5 = vector.shape_cast %2 : vector<20x128xf32> to vector<1x20x128xf32>
    tpu.vector_store %arg11[%c0_2, %c0_3, %c0_4], %5 {strides = array<i32>} : memref<5x20x128xf32, #tpu.memory_space<vmem>>, vector<1x20x128xf32>,
    %6 = vector.extract_strided_slice %1 {offsets = [0, 8], sizes = [20, 128], strides = [1, 1]} : vector<20x160xf32> to vector<20x128xf32>
    %c1 = arith.constant 1 : index
    %c0_5 = arith.constant 0 : index
    %c0_6 = arith.constant 0 : index
    %7 = vector.load %arg11[%c1, %c0_5, %c0_6] : memref<5x20x128xf32, #tpu.memory_space<vmem>>, vector<1x20x128xf32>
    %8 = vector.shape_cast %7 : vector<1x20x128xf32> to vector<20x128xf32>
    %9 = vector.shape_cast %6 : vector<20x128xf32> to vector<1x20x128xf32>
    tpu.vector_store %arg11[%c1, %c0_5, %c0_6], %9 {strides = array<i32>} : memref<5x20x128xf32, #tpu.memory_space<vmem>>, vector<1x20x128xf32>,
    %10 = vector.extract_strided_slice %1 {offsets = [0, 16], sizes = [20, 128], strides = [1, 1]} : vector<20x160xf32> to vector<20x128xf32>
    %c2 = arith.constant 2 : index
    %c0_7 = arith.constant 0 : index
    %c0_8 = arith.constant 0 : index
    %11 = vector.load %arg11[%c2, %c0_7, %c0_8] : memref<5x20x128xf32, #tpu.memory_space<vmem>>, vector<1x20x128xf32>
    %12 = vector.shape_cast %11 : vector<1x20x128xf32> to vector<20x128xf32>
    %13 = vector.shape_cast %10 : vector<20x128xf32> to vector<1x20x128xf32>
    tpu.vector_store %arg11[%c2, %c0_7, %c0_8], %13 {strides = array<i32>} : memref<5x20x128xf32, #tpu.memory_space<vmem>>, vector<1x20x128xf32>,
    %14 = vector.extract_strided_slice %1 {offsets = [0, 24], sizes = [20, 128], strides = [1, 1]} : vector<20x160xf32> to vector<20x128xf32>
    %c3 = arith.constant 3 : index
    %c0_9 = arith.constant 0 : index
    %c0_10 = arith.constant 0 : index
    %15 = vector.load %arg11[%c3, %c0_9, %c0_10] : memref<5x20x128xf32, #tpu.memory_space<vmem>>, vector<1x20x128xf32>
    %16 = vector.shape_cast %15 : vector<1x20x128xf32> to vector<20x128xf32>
    %17 = vector.shape_cast %14 : vector<20x128xf32> to vector<1x20x128xf32>
    tpu.vector_store %arg11[%c3, %c0_9, %c0_10], %17 {strides = array<i32>} : memref<5x20x128xf32, #tpu.memory_space<vmem>>, vector<1x20x128xf32>,
    %18 = vector.extract_strided_slice %1 {offsets = [0, 32], sizes = [20, 128], strides = [1, 1]} : vector<20x160xf32> to vector<20x128xf32>
    %c4 = arith.constant 4 : index
    %c0_11 = arith.constant 0 : index
    %c0_12 = arith.constant 0 : index
    %19 = vector.load %arg11[%c4, %c0_11, %c0_12] : memref<5x20x128xf32, #tpu.memory_space<vmem>>, vector<1x20x128xf32>
    %20 = vector.shape_cast %19 : vector<1x20x128xf32> to vector<20x128xf32>
    %21 = vector.shape_cast %18 : vector<20x128xf32> to vector<1x20x128xf32>
    tpu.vector_store %arg11[%c4, %c0_11, %c0_12], %21 {strides = array<i32>} : memref<5x20x128xf32, #tpu.memory_space<vmem>>, vector<1x20x128xf32>,
    %c0_13 = arith.constant 0 : index
    %c0_14 = arith.constant 0 : index
    %c0_15 = arith.constant 0 : index
    %22 = vector.load %arg11[%c0_13, %c0_14, %c0_15] : memref<5x20x128xf32, #tpu.memory_space<vmem>>, vector<1x16x128xf32>
    %23 = vector.shape_cast %22 : vector<1x16x128xf32> to vector<16x128xf32>
    %c0_16 = arith.constant 0 : index
    %c0_17 = arith.constant 0 : index
    %24 = vector.load %arg4[%c0_16, %c0_17] : memref<400x128xf32, #tpu.memory_space<vmem>>, vector<16x128xf32>
    %25 = arith.mulf %23, %24 : vector<16x128xf32>
    %c1_18 = arith.constant 1 : index
    %c0_19 = arith.constant 0 : index
    %c0_20 = arith.constant 0 : index
    %26 = vector.load %arg11[%c1_18, %c0_19, %c0_20] : memref<5x20x128xf32, #tpu.memory_space<vmem>>, vector<1x16x128xf32>
    %27 = vector.shape_cast %26 : vector<1x16x128xf32> to vector<16x128xf32>
    %c16 = arith.constant 16 : index
    %c0_21 = arith.constant 0 : index
    %28 = vector.load %arg4[%c16, %c0_21] : memref<400x128xf32, #tpu.memory_space<vmem>>, vector<16x128xf32>
    %29 = arith.mulf %27, %28 : vector<16x128xf32>
    %30 = arith.addf %25, %29 : vector<16x128xf32>
    %c2_22 = arith.constant 2 : index
    %c0_23 = arith.constant 0 : index
    %c0_24 = arith.constant 0 : index
    %31 = vector.load %arg11[%c2_22, %c0_23, %c0_24] : memref<5x20x128xf32, #tpu.memory_space<vmem>>, vector<1x16x128xf32>
    %32 = vector.shape_cast %31 : vector<1x16x128xf32> to vector<16x128xf32>
    %c32 = arith.constant 32 : index
    %c0_25 = arith.constant 0 : index
    %33 = vector.load %arg4[%c32, %c0_25] : memref<400x128xf32, #tpu.memory_space<vmem>>, vector<16x128xf32>
    %34 = arith.mulf %32, %33 : vector<16x128xf32>
    %35 = arith.addf %30, %34 : vector<16x128xf32>
    %c3_26 = arith.constant 3 : index
    %c0_27 = arith.constant 0 : index
    %c0_28 = arith.constant 0 : index
    %36 = vector.load %arg11[%c3_26, %c0_27, %c0_28] : memref<5x20x128xf32, #tpu.memory_space<vmem>>, vector<1x16x128xf32>
    %37 = vector.shape_cast %36 : vector<1x16x128xf32> to vector<16x128xf32>
    %c48 = arith.constant 48 : index
    %c0_29 = arith.constant 0 : index
    %38 = vector.load %arg4[%c48, %c0_29] : memref<400x128xf32, #tpu.memory_space<vmem>>, vector<16x128xf32>
    %39 = arith.mulf %37, %38 : vector<16x128xf32>
    %40 = arith.addf %35, %39 : vector<16x128xf32>
    %c4_30 = arith.constant 4 : index
    %c0_31 = arith.constant 0 : index
    %c0_32 = arith.constant 0 : index
    %41 = vector.load %arg11[%c4_30, %c0_31, %c0_32] : memref<5x20x128xf32, #tpu.memory_space<vmem>>, vector<1x16x128xf32>
    %42 = vector.shape_cast %41 : vector<1x16x128xf32> to vector<16x128xf32>
    %c64 = arith.constant 64 : index
    %c0_33 = arith.constant 0 : index
    %43 = vector.load %arg4[%c64, %c0_33] : memref<400x128xf32, #tpu.memory_space<vmem>>, vector<16x128xf32>
    %44 = arith.mulf %42, %43 : vector<16x128xf32>
    %45 = arith.addf %40, %44 : vector<16x128xf32>
    %c0_34 = arith.constant 0 : index
    %c1_35 = arith.constant 1 : index
    %c0_36 = arith.constant 0 : index
    %46 = vector.load %arg11[%c0_34, %c1_35, %c0_36] : memref<5x20x128xf32, #tpu.memory_space<vmem>>, vector<1x16x128xf32>
    %47 = vector.shape_cast %46 : vector<1x16x128xf32> to vector<16x128xf32>
    %c80 = arith.constant 80 : index
    %c0_37 = arith.constant 0 : index
    %48 = vector.load %arg4[%c80, %c0_37] : memref<400x128xf32, #tpu.memory_space<vmem>>, vector<16x128xf32>
    %49 = arith.mulf %47, %48 : vector<16x128xf32>
    %50 = arith.addf %45, %49 : vector<16x128xf32>
    %c1_38 = arith.constant 1 : index
    %c1_39 = arith.constant 1 : index
    %c0_40 = arith.constant 0 : index
    %51 = vector.load %arg11[%c1_38, %c1_39, %c0_40] : memref<5x20x128xf32, #tpu.memory_space<vmem>>, vector<1x16x128xf32>
    %52 = vector.shape_cast %51 : vector<1x16x128xf32> to vector<16x128xf32>
    %c96 = arith.constant 96 : index
    %c0_41 = arith.constant 0 : index
    %53 = vector.load %arg4[%c96, %c0_41] : memref<400x128xf32, #tpu.memory_space<vmem>>, vector<16x128xf32>
    %54 = arith.mulf %52, %53 : vector<16x128xf32>
    %55 = arith.addf %50, %54 : vector<16x128xf32>
    %c0_42 = arith.constant 0 : index
    %c0_43 = arith.constant 0 : index
    %56 = vector.load %arg2[%c0_42, %c0_43] : memref<144x128xf32, #tpu.memory_space<vmem>>, vector<16x128xf32>
    %57 = arith.mulf %52, %56 : vector<16x128xf32>
    %c2_44 = arith.constant 2 : index
    %c1_45 = arith.constant 1 : index
    %c0_46 = arith.constant 0 : index
    %58 = vector.load %arg11[%c2_44, %c1_45, %c0_46] : memref<5x20x128xf32, #tpu.memory_space<vmem>>, vector<1x16x128xf32>
    %59 = vector.shape_cast %58 : vector<1x16x128xf32> to vector<16x128xf32>
    %c112 = arith.constant 112 : index
    %c0_47 = arith.constant 0 : index
    %60 = vector.load %arg4[%c112, %c0_47] : memref<400x128xf32, #tpu.memory_space<vmem>>, vector<16x128xf32>
    %61 = arith.mulf %59, %60 : vector<16x128xf32>
    %62 = arith.addf %55, %61 : vector<16x128xf32>
    %c16_48 = arith.constant 16 : index
    %c0_49 = arith.constant 0 : index
    %63 = vector.load %arg2[%c16_48, %c0_49] : memref<144x128xf32, #tpu.memory_space<vmem>>, vector<16x128xf32>
    %64 = arith.mulf %59, %63 : vector<16x128xf32>
    %65 = arith.addf %57, %64 : vector<16x128xf32>
    %c3_50 = arith.constant 3 : index
    %c1_51 = arith.constant 1 : index
    %c0_52 = arith.constant 0 : index
    %66 = vector.load %arg11[%c3_50, %c1_51, %c0_52] : memref<5x20x128xf32, #tpu.memory_space<vmem>>, vector<1x16x128xf32>
    %67 = vector.shape_cast %66 : vector<1x16x128xf32> to vector<16x128xf32>
    %c128 = arith.constant 128 : index
    %c0_53 = arith.constant 0 : index
    %68 = vector.load %arg4[%c128, %c0_53] : memref<400x128xf32, #tpu.memory_space<vmem>>, vector<16x128xf32>
    %69 = arith.mulf %67, %68 : vector<16x128xf32>
    %70 = arith.addf %62, %69 : vector<16x128xf32>
    %c32_54 = arith.constant 32 : index
    %c0_55 = arith.constant 0 : index
    %71 = vector.load %arg2[%c32_54, %c0_55] : memref<144x128xf32, #tpu.memory_space<vmem>>, vector<16x128xf32>
    %72 = arith.mulf %67, %71 : vector<16x128xf32>
    %73 = arith.addf %65, %72 : vector<16x128xf32>
    %c4_56 = arith.constant 4 : index
    %c1_57 = arith.constant 1 : index
    %c0_58 = arith.constant 0 : index
    %74 = vector.load %arg11[%c4_56, %c1_57, %c0_58] : memref<5x20x128xf32, #tpu.memory_space<vmem>>, vector<1x16x128xf32>
    %75 = vector.shape_cast %74 : vector<1x16x128xf32> to vector<16x128xf32>
    %c144 = arith.constant 144 : index
    %c0_59 = arith.constant 0 : index
    %76 = vector.load %arg4[%c144, %c0_59] : memref<400x128xf32, #tpu.memory_space<vmem>>, vector<16x128xf32>
    %77 = arith.mulf %75, %76 : vector<16x128xf32>
    %78 = arith.addf %70, %77 : vector<16x128xf32>
    %c0_60 = arith.constant 0 : index
    %c2_61 = arith.constant 2 : index
    %c0_62 = arith.constant 0 : index
    %79 = vector.load %arg11[%c0_60, %c2_61, %c0_62] : memref<5x20x128xf32, #tpu.memory_space<vmem>>, vector<1x16x128xf32>
    %80 = vector.shape_cast %79 : vector<1x16x128xf32> to vector<16x128xf32>
    %c160 = arith.constant 160 : index
    %c0_63 = arith.constant 0 : index
    %81 = vector.load %arg4[%c160, %c0_63] : memref<400x128xf32, #tpu.memory_space<vmem>>, vector<16x128xf32>
    %82 = arith.mulf %80, %81 : vector<16x128xf32>
    %83 = arith.addf %78, %82 : vector<16x128xf32>
    %c1_64 = arith.constant 1 : index
    %c2_65 = arith.constant 2 : index
    %c0_66 = arith.constant 0 : index
    %84 = vector.load %arg11[%c1_64, %c2_65, %c0_66] : memref<5x20x128xf32, #tpu.memory_space<vmem>>, vector<1x16x128xf32>
    %85 = vector.shape_cast %84 : vector<1x16x128xf32> to vector<16x128xf32>
    %c176 = arith.constant 176 : index
    %c0_67 = arith.constant 0 : index
    %86 = vector.load %arg4[%c176, %c0_67] : memref<400x128xf32, #tpu.memory_space<vmem>>, vector<16x128xf32>
    %87 = arith.mulf %85, %86 : vector<16x128xf32>
    %88 = arith.addf %83, %87 : vector<16x128xf32>
    %c48_68 = arith.constant 48 : index
    %c0_69 = arith.constant 0 : index
    %89 = vector.load %arg2[%c48_68, %c0_69] : memref<144x128xf32, #tpu.memory_space<vmem>>, vector<16x128xf32>
    %90 = arith.mulf %85, %89 : vector<16x128xf32>
    %91 = arith.addf %73, %90 : vector<16x128xf32>
    %c2_70 = arith.constant 2 : index
    %c2_71 = arith.constant 2 : index
    %c0_72 = arith.constant 0 : index
    %92 = vector.load %arg11[%c2_70, %c2_71, %c0_72] : memref<5x20x128xf32, #tpu.memory_space<vmem>>, vector<1x16x128xf32>
    %93 = vector.shape_cast %92 : vector<1x16x128xf32> to vector<16x128xf32>
    %c192 = arith.constant 192 : index
    %c0_73 = arith.constant 0 : index
    %94 = vector.load %arg4[%c192, %c0_73] : memref<400x128xf32, #tpu.memory_space<vmem>>, vector<16x128xf32>
    %95 = arith.mulf %93, %94 : vector<16x128xf32>
    %96 = arith.addf %88, %95 : vector<16x128xf32>
    %c64_74 = arith.constant 64 : index
    %c0_75 = arith.constant 0 : index
    %97 = vector.load %arg2[%c64_74, %c0_75] : memref<144x128xf32, #tpu.memory_space<vmem>>, vector<16x128xf32>
    %98 = arith.mulf %93, %97 : vector<16x128xf32>
    %99 = arith.addf %91, %98 : vector<16x128xf32>
    %c3_76 = arith.constant 3 : index
    %c2_77 = arith.constant 2 : index
    %c0_78 = arith.constant 0 : index
    %100 = vector.load %arg11[%c3_76, %c2_77, %c0_78] : memref<5x20x128xf32, #tpu.memory_space<vmem>>, vector<1x16x128xf32>
    %101 = vector.shape_cast %100 : vector<1x16x128xf32> to vector<16x128xf32>
    %c208 = arith.constant 208 : index
    %c0_79 = arith.constant 0 : index
    %102 = vector.load %arg4[%c208, %c0_79] : memref<400x128xf32, #tpu.memory_space<vmem>>, vector<16x128xf32>
    %103 = arith.mulf %101, %102 : vector<16x128xf32>
    %104 = arith.addf %96, %103 : vector<16x128xf32>
    %c80_80 = arith.constant 80 : index
    %c0_81 = arith.constant 0 : index
    %105 = vector.load %arg2[%c80_80, %c0_81] : memref<144x128xf32, #tpu.memory_space<vmem>>, vector<16x128xf32>
    %106 = arith.mulf %101, %105 : vector<16x128xf32>
    %107 = arith.addf %99, %106 : vector<16x128xf32>
    %c4_82 = arith.constant 4 : index
    %c2_83 = arith.constant 2 : index
    %c0_84 = arith.constant 0 : index
    %108 = vector.load %arg11[%c4_82, %c2_83, %c0_84] : memref<5x20x128xf32, #tpu.memory_space<vmem>>, vector<1x16x128xf32>
    %109 = vector.shape_cast %108 : vector<1x16x128xf32> to vector<16x128xf32>
    %c224 = arith.constant 224 : index
    %c0_85 = arith.constant 0 : index
    %110 = vector.load %arg4[%c224, %c0_85] : memref<400x128xf32, #tpu.memory_space<vmem>>, vector<16x128xf32>
    %111 = arith.mulf %109, %110 : vector<16x128xf32>
    %112 = arith.addf %104, %111 : vector<16x128xf32>
    %c0_86 = arith.constant 0 : index
    %c3_87 = arith.constant 3 : index
    %c0_88 = arith.constant 0 : index
    %113 = vector.load %arg11[%c0_86, %c3_87, %c0_88] : memref<5x20x128xf32, #tpu.memory_space<vmem>>, vector<1x16x128xf32>
    %114 = vector.shape_cast %113 : vector<1x16x128xf32> to vector<16x128xf32>
    %c240 = arith.constant 240 : index
    %c0_89 = arith.constant 0 : index
    %115 = vector.load %arg4[%c240, %c0_89] : memref<400x128xf32, #tpu.memory_space<vmem>>, vector<16x128xf32>
    %116 = arith.mulf %114, %115 : vector<16x128xf32>
    %117 = arith.addf %112, %116 : vector<16x128xf32>
    %c1_90 = arith.constant 1 : index
    %c3_91 = arith.constant 3 : index
    %c0_92 = arith.constant 0 : index
    %118 = vector.load %arg11[%c1_90, %c3_91, %c0_92] : memref<5x20x128xf32, #tpu.memory_space<vmem>>, vector<1x16x128xf32>
    %119 = vector.shape_cast %118 : vector<1x16x128xf32> to vector<16x128xf32>
    %c256 = arith.constant 256 : index
    %c0_93 = arith.constant 0 : index
    %120 = vector.load %arg4[%c256, %c0_93] : memref<400x128xf32, #tpu.memory_space<vmem>>, vector<16x128xf32>
    %121 = arith.mulf %119, %120 : vector<16x128xf32>
    %122 = arith.addf %117, %121 : vector<16x128xf32>
    %c96_94 = arith.constant 96 : index
    %c0_95 = arith.constant 0 : index
    %123 = vector.load %arg2[%c96_94, %c0_95] : memref<144x128xf32, #tpu.memory_space<vmem>>, vector<16x128xf32>
    %124 = arith.mulf %119, %123 : vector<16x128xf32>
    %125 = arith.addf %107, %124 : vector<16x128xf32>
    %c2_96 = arith.constant 2 : index
    %c3_97 = arith.constant 3 : index
    %c0_98 = arith.constant 0 : index
    %126 = vector.load %arg11[%c2_96, %c3_97, %c0_98] : memref<5x20x128xf32, #tpu.memory_space<vmem>>, vector<1x16x128xf32>
    %127 = vector.shape_cast %126 : vector<1x16x128xf32> to vector<16x128xf32>
    %c272 = arith.constant 272 : index
    %c0_99 = arith.constant 0 : index
    %128 = vector.load %arg4[%c272, %c0_99] : memref<400x128xf32, #tpu.memory_space<vmem>>, vector<16x128xf32>
    %129 = arith.mulf %127, %128 : vector<16x128xf32>
    %130 = arith.addf %122, %129 : vector<16x128xf32>
    %c112_100 = arith.constant 112 : index
    %c0_101 = arith.constant 0 : index
    %131 = vector.load %arg2[%c112_100, %c0_101] : memref<144x128xf32, #tpu.memory_space<vmem>>, vector<16x128xf32>
    %132 = arith.mulf %127, %131 : vector<16x128xf32>
    %133 = arith.addf %125, %132 : vector<16x128xf32>
    %c3_102 = arith.constant 3 : index
    %c3_103 = arith.constant 3 : index
    %c0_104 = arith.constant 0 : index
    %134 = vector.load %arg11[%c3_102, %c3_103, %c0_104] : memref<5x20x128xf32, #tpu.memory_space<vmem>>, vector<1x16x128xf32>
    %135 = vector.shape_cast %134 : vector<1x16x128xf32> to vector<16x128xf32>
    %c288 = arith.constant 288 : index
    %c0_105 = arith.constant 0 : index
    %136 = vector.load %arg4[%c288, %c0_105] : memref<400x128xf32, #tpu.memory_space<vmem>>, vector<16x128xf32>
    %137 = arith.mulf %135, %136 : vector<16x128xf32>
    %138 = arith.addf %130, %137 : vector<16x128xf32>
    %c128_106 = arith.constant 128 : index
    %c0_107 = arith.constant 0 : index
    %139 = vector.load %arg2[%c128_106, %c0_107] : memref<144x128xf32, #tpu.memory_space<vmem>>, vector<16x128xf32>
    %140 = arith.mulf %135, %139 : vector<16x128xf32>
    %141 = arith.addf %133, %140 : vector<16x128xf32>
    %c4_108 = arith.constant 4 : index
    %c3_109 = arith.constant 3 : index
    %c0_110 = arith.constant 0 : index
    %142 = vector.load %arg11[%c4_108, %c3_109, %c0_110] : memref<5x20x128xf32, #tpu.memory_space<vmem>>, vector<1x16x128xf32>
    %143 = vector.shape_cast %142 : vector<1x16x128xf32> to vector<16x128xf32>
    %c304 = arith.constant 304 : index
    %c0_111 = arith.constant 0 : index
    %144 = vector.load %arg4[%c304, %c0_111] : memref<400x128xf32, #tpu.memory_space<vmem>>, vector<16x128xf32>
    %145 = arith.mulf %143, %144 : vector<16x128xf32>
    %146 = arith.addf %138, %145 : vector<16x128xf32>
    %c0_112 = arith.constant 0 : index
    %c4_113 = arith.constant 4 : index
    %c0_114 = arith.constant 0 : index
    %147 = vector.load %arg11[%c0_112, %c4_113, %c0_114] : memref<5x20x128xf32, #tpu.memory_space<vmem>>, vector<1x16x128xf32>
    %148 = vector.shape_cast %147 : vector<1x16x128xf32> to vector<16x128xf32>
    %c320 = arith.constant 320 : index
    %c0_115 = arith.constant 0 : index
    %149 = vector.load %arg4[%c320, %c0_115] : memref<400x128xf32, #tpu.memory_space<vmem>>, vector<16x128xf32>
    %150 = arith.mulf %148, %149 : vector<16x128xf32>
    %151 = arith.addf %146, %150 : vector<16x128xf32>
    %c1_116 = arith.constant 1 : index
    %c4_117 = arith.constant 4 : index
    %c0_118 = arith.constant 0 : index
    %152 = vector.load %arg11[%c1_116, %c4_117, %c0_118] : memref<5x20x128xf32, #tpu.memory_space<vmem>>, vector<1x16x128xf32>
    %153 = vector.shape_cast %152 : vector<1x16x128xf32> to vector<16x128xf32>
    %c336 = arith.constant 336 : index
    %c0_119 = arith.constant 0 : index
    %154 = vector.load %arg4[%c336, %c0_119] : memref<400x128xf32, #tpu.memory_space<vmem>>, vector<16x128xf32>
    %155 = arith.mulf %153, %154 : vector<16x128xf32>
    %156 = arith.addf %151, %155 : vector<16x128xf32>
    %c2_120 = arith.constant 2 : index
    %c4_121 = arith.constant 4 : index
    %c0_122 = arith.constant 0 : index
    %157 = vector.load %arg11[%c2_120, %c4_121, %c0_122] : memref<5x20x128xf32, #tpu.memory_space<vmem>>, vector<1x16x128xf32>
    %158 = vector.shape_cast %157 : vector<1x16x128xf32> to vector<16x128xf32>
    %c352 = arith.constant 352 : index
    %c0_123 = arith.constant 0 : index
    %159 = vector.load %arg4[%c352, %c0_123] : memref<400x128xf32, #tpu.memory_space<vmem>>, vector<16x128xf32>
    %160 = arith.mulf %158, %159 : vector<16x128xf32>
    %161 = arith.addf %156, %160 : vector<16x128xf32>
    %c3_124 = arith.constant 3 : index
    %c4_125 = arith.constant 4 : index
    %c0_126 = arith.constant 0 : index
    %162 = vector.load %arg11[%c3_124, %c4_125, %c0_126] : memref<5x20x128xf32, #tpu.memory_space<vmem>>, vector<1x16x128xf32>
    %163 = vector.shape_cast %162 : vector<1x16x128xf32> to vector<16x128xf32>
    %c368 = arith.constant 368 : index
    %c0_127 = arith.constant 0 : index
    %164 = vector.load %arg4[%c368, %c0_127] : memref<400x128xf32, #tpu.memory_space<vmem>>, vector<16x128xf32>
    %165 = arith.mulf %163, %164 : vector<16x128xf32>
    %166 = arith.addf %161, %165 : vector<16x128xf32>
    %c4_128 = arith.constant 4 : index
    %c4_129 = arith.constant 4 : index
    %c0_130 = arith.constant 0 : index
    %167 = vector.load %arg11[%c4_128, %c4_129, %c0_130] : memref<5x20x128xf32, #tpu.memory_space<vmem>>, vector<1x16x128xf32>
    %168 = vector.shape_cast %167 : vector<1x16x128xf32> to vector<16x128xf32>
    %c384 = arith.constant 384 : index
    %c0_131 = arith.constant 0 : index
    %169 = vector.load %arg4[%c384, %c0_131] : memref<400x128xf32, #tpu.memory_space<vmem>>, vector<16x128xf32>
    %170 = arith.mulf %168, %169 : vector<16x128xf32>
    %171 = arith.addf %166, %170 : vector<16x128xf32>
    %c0_132 = arith.constant 0 : index
    %c0_133 = arith.constant 0 : index
    %172 = vector.load %arg3[%c0_132, %c0_133] : memref<16x128xf32, #tpu.memory_space<vmem>>, vector<16x128xf32>
    %173 = arith.addf %141, %172 : vector<16x128xf32>
    %cst = arith.constant 0.000000e+00 : f32
    %174 = vector.broadcast %cst : f32 to vector<16x128xf32>
    %175 = arith.maximumf %173, %174 : vector<16x128xf32>
    %c0_134 = arith.constant 0 : index
    %c0_135 = arith.constant 0 : index
    %176 = vector.load %arg5[%c0_134, %c0_135] : memref<16x128xf32, #tpu.memory_space<vmem>>, vector<16x128xf32>
    %177 = arith.addf %171, %176 : vector<16x128xf32>
    %cst_136 = arith.constant 0.000000e+00 : f32
    %178 = vector.broadcast %cst_136 : f32 to vector<16x128xf32>
    %179 = arith.maximumf %177, %178 : vector<16x128xf32>
    %c0_137 = arith.constant 0 : index
    %c0_138 = arith.constant 0 : index
    %c0_139 = arith.constant 0 : index
    %c0_140 = arith.constant 0 : index
    %180 = vector.load %arg12[%c0_137, %c0_138, %c0_139, %c0_140] : memref<1x2x16x128xf32, #tpu.memory_space<vmem>>, vector<1x1x16x128xf32>
    %181 = vector.shape_cast %180 : vector<1x1x16x128xf32> to vector<16x128xf32>
    %182 = vector.shape_cast %175 : vector<16x128xf32> to vector<1x1x16x128xf32>
    tpu.vector_store %arg12[%c0_137, %c0_138, %c0_139, %c0_140], %182 {strides = array<i32>} : memref<1x2x16x128xf32, #tpu.memory_space<vmem>>, vector<1x1x16x128xf32>,
    %c0_141 = arith.constant 0 : index
    %c1_142 = arith.constant 1 : index
    %c0_143 = arith.constant 0 : index
    %c0_144 = arith.constant 0 : index
    %183 = vector.load %arg12[%c0_141, %c1_142, %c0_143, %c0_144] : memref<1x2x16x128xf32, #tpu.memory_space<vmem>>, vector<1x1x16x128xf32>
    %184 = vector.shape_cast %183 : vector<1x1x16x128xf32> to vector<16x128xf32>
    %185 = vector.shape_cast %179 : vector<16x128xf32> to vector<1x1x16x128xf32>
    tpu.vector_store %arg12[%c0_141, %c1_142, %c0_143, %c0_144], %185 {strides = array<i32>} : memref<1x2x16x128xf32, #tpu.memory_space<vmem>>, vector<1x1x16x128xf32>,
    %186 = arith.addf %175, %179 : vector<16x128xf32>
    %cst_145 = arith.constant dense<0.000000e+00> : vector<128xf32>
    %187 = vector.multi_reduction <add>, %186, %cst_145 [0] : vector<16x128xf32> to vector<128xf32>
    %188 = vector.shape_cast %187 : vector<128xf32> to vector<1x128xf32>
    %cst_146 = arith.constant 3.906250e-03 : f32
    %189 = vector.broadcast %cst_146 : f32 to vector<1x128xf32>
    %190 = arith.mulf %188, %189 : vector<1x128xf32>
    %c0_147 = arith.constant 0 : index
    %c0_148 = arith.constant 0 : index
    %191 = vector.load %arg6[%c0_147, %c0_148] : memref<128x32xf32, #tpu.memory_space<vmem>>, vector<128x32xf32>
    %cst_149 = arith.constant dense<0.000000e+00> : vector<1x32xf32>
    %192 = tpu.matmul %190, %191, %cst_149 {dimension_numbers = #tpu.dot_dimension_numbers<[1], [0], [0], [1], [0, 0, 1, 1], [], []>} : vector<1x128xf32>, vector<128x32xf32>, vector<1x32xf32> -> vector<1x32xf32>
    %c0_150 = arith.constant 0 : index
    %c0_151 = arith.constant 0 : index
    %193 = vector.load %arg7[%c0_150, %c0_151] : memref<1x32xf32, #tpu.memory_space<vmem>>, vector<1x32xf32>
    %194 = arith.addf %192, %193 : vector<1x32xf32>
    %cst_152 = arith.constant 0.000000e+00 : f32
    %195 = vector.broadcast %cst_152 : f32 to vector<1x32xf32>
    %196 = arith.maximumf %194, %195 : vector<1x32xf32>
    %c0_153 = arith.constant 0 : index
    %c0_154 = arith.constant 0 : index
    %197 = vector.load %arg8[%c0_153, %c0_154] : memref<32x256xf32, #tpu.memory_space<vmem>>, vector<32x256xf32>
    %cst_155 = arith.constant dense<0.000000e+00> : vector<1x256xf32>
    %198 = tpu.matmul %196, %197, %cst_155 {dimension_numbers = #tpu.dot_dimension_numbers<[1], [0], [0], [1], [0, 0, 1, 1], [], []>} : vector<1x32xf32>, vector<32x256xf32>, vector<1x256xf32> -> vector<1x256xf32>
    %c0_156 = arith.constant 0 : index
    %c0_157 = arith.constant 0 : index
    %199 = vector.load %arg9[%c0_156, %c0_157] : memref<1x256xf32, #tpu.memory_space<vmem>>, vector<1x256xf32>
    %200 = arith.addf %198, %199 : vector<1x256xf32>
    %201 = vector.extract_strided_slice %200 {offsets = [0, 0], sizes = [1, 128], strides = [1, 1]} : vector<1x256xf32> to vector<1x128xf32>
    %202 = vector.extract_strided_slice %200 {offsets = [0, 128], sizes = [1, 128], strides = [1, 1]} : vector<1x256xf32> to vector<1x128xf32>
    %203 = arith.maximumf %201, %202 : vector<1x128xf32>
    %204 = arith.subf %201, %203 : vector<1x128xf32>
    %205 = math.exp %204 : vector<1x128xf32>
    %206 = arith.subf %202, %203 : vector<1x128xf32>
    %207 = math.exp %206 : vector<1x128xf32>
    %208 = arith.addf %205, %207 : vector<1x128xf32>
    %cst_158 = arith.constant 1.000000e+00 : f32
    %209 = vector.broadcast %cst_158 : f32 to vector<1x128xf32>
    %210 = arith.divf %209, %208 : vector<1x128xf32>
    %211 = arith.mulf %205, %210 : vector<1x128xf32>
    %212 = arith.mulf %207, %210 : vector<1x128xf32>
    %c0_159 = arith.constant 0 : index
    %c0_160 = arith.constant 0 : index
    %c0_161 = arith.constant 0 : index
    %c0_162 = arith.constant 0 : index
    %213 = vector.load %arg12[%c0_159, %c0_160, %c0_161, %c0_162] : memref<1x2x16x128xf32, #tpu.memory_space<vmem>>, vector<1x1x16x128xf32>
    %214 = vector.shape_cast %213 : vector<1x1x16x128xf32> to vector<16x128xf32>
    %215 = vector.broadcast %211 : vector<1x128xf32> to vector<16x128xf32>
    %216 = arith.mulf %214, %215 : vector<16x128xf32>
    %c0_163 = arith.constant 0 : index
    %c1_164 = arith.constant 1 : index
    %c0_165 = arith.constant 0 : index
    %c0_166 = arith.constant 0 : index
    %217 = vector.load %arg12[%c0_163, %c1_164, %c0_165, %c0_166] : memref<1x2x16x128xf32, #tpu.memory_space<vmem>>, vector<1x1x16x128xf32>
    %218 = vector.shape_cast %217 : vector<1x1x16x128xf32> to vector<16x128xf32>
    %219 = vector.broadcast %212 : vector<1x128xf32> to vector<16x128xf32>
    %220 = arith.mulf %218, %219 : vector<16x128xf32>
    %221 = arith.addf %216, %220 : vector<16x128xf32>
    %c0_167 = arith.constant 0 : index
    %c0_168 = arith.constant 0 : index
    %c0_169 = arith.constant 0 : index
    %222 = vector.load %arg10[%c0_167, %c0_168, %c0_169] : memref<1x16x128xf32, #tpu.memory_space<vmem>>, vector<1x16x128xf32>
    %223 = vector.shape_cast %222 : vector<1x16x128xf32> to vector<16x128xf32>
    %224 = vector.shape_cast %221 : vector<16x128xf32> to vector<1x16x128xf32>
    tpu.vector_store %arg10[%c0_167, %c0_168, %c0_169], %224 {strides = array<i32>} : memref<1x16x128xf32, #tpu.memory_space<vmem>>, vector<1x16x128xf32>,
    return
  }
  func.func @transform_0(%arg0: i32) -> (i32, i32, i32) {
    %c0_i32 = arith.constant 0 : i32
    %c0_i32_0 = arith.constant 0 : i32
    %c0_i32_1 = arith.constant 0 : i32
    return %arg0, %c0_i32, %c0_i32_0 : i32, i32, i32
  }
  func.func @transform_1(%arg0: i32) -> (i32, i32) {
    %c0_i32 = arith.constant 0 : i32
    %c0_i32_0 = arith.constant 0 : i32
    %c0_i32_1 = arith.constant 0 : i32
    return %c0_i32, %c0_i32_0 : i32, i32
  }
  func.func @transform_2(%arg0: i32) -> (i32, i32) {
    %c0_i32 = arith.constant 0 : i32
    %c0_i32_0 = arith.constant 0 : i32
    %c0_i32_1 = arith.constant 0 : i32
    return %c0_i32, %c0_i32_0 : i32, i32
  }
  func.func @transform_3(%arg0: i32) -> (i32, i32) {
    %c0_i32 = arith.constant 0 : i32
    %c0_i32_0 = arith.constant 0 : i32
    %c0_i32_1 = arith.constant 0 : i32
    return %c0_i32, %c0_i32_0 : i32, i32
  }
  func.func @transform_4(%arg0: i32) -> (i32, i32) {
    %c0_i32 = arith.constant 0 : i32
    %c0_i32_0 = arith.constant 0 : i32
    %c0_i32_1 = arith.constant 0 : i32
    return %c0_i32, %c0_i32_0 : i32, i32
  }
  func.func @transform_5(%arg0: i32) -> (i32, i32) {
    %c0_i32 = arith.constant 0 : i32
    %c0_i32_0 = arith.constant 0 : i32
    %c0_i32_1 = arith.constant 0 : i32
    return %c0_i32, %c0_i32_0 : i32, i32
  }
  func.func @transform_6(%arg0: i32) -> (i32, i32) {
    %c0_i32 = arith.constant 0 : i32
    %c0_i32_0 = arith.constant 0 : i32
    %c0_i32_1 = arith.constant 0 : i32
    return %c0_i32, %c0_i32_0 : i32, i32
  }
  func.func @transform_7(%arg0: i32) -> (i32, i32) {
    %c0_i32 = arith.constant 0 : i32
    %c0_i32_0 = arith.constant 0 : i32
    %c0_i32_1 = arith.constant 0 : i32
    return %c0_i32, %c0_i32_0 : i32, i32
  }
  func.func @transform_8(%arg0: i32) -> (i32, i32) {
    %c0_i32 = arith.constant 0 : i32
    %c0_i32_0 = arith.constant 0 : i32
    %c0_i32_1 = arith.constant 0 : i32
    return %c0_i32, %c0_i32_0 : i32, i32
  }
  func.func @transform_9(%arg0: i32) -> (i32, i32, i32) {
    %c0_i32 = arith.constant 0 : i32
    %c0_i32_0 = arith.constant 0 : i32
    %c0_i32_1 = arith.constant 0 : i32
    return %arg0, %c0_i32, %c0_i32_0 : i32, i32, i32
  }
}

</mosaic_0001>

<llo_original>
// kernel: tpu_custom_call.1
$region0: #{tpu_custom_call.1}
  #allocation0 [shape = 'u32[]', space=smem, size = 0x4, offset = 0x4, fixed_abs, tag = 'smem constant byte address 0x4 - core index']
  #allocation1 [shape = 'u32[144,128]{1,0:T(1,128)}', space=vmem, size = 0x12000, scoped, tag = 'internal scratch']
  #allocation2 [shape = 'f32[5,20,128]{2,1,0:T(8,128)}', space=vmem, size = 0xf000, scoped, tag = 'scratch operand']
  #allocation3 [shape = 'f32[1,2,16,128]{3,2,1,0:T(8,128)}', space=vmem, size = 0x4000, scoped, tag = 'scratch operand']
  %s0 = inlined_call_operand.vmem [shape: f32[2,20,160], index: 0, kind: input, shape index: {}]
  %s1 = inlined_call_operand.vmem [shape: f32[144,128], index: 1, kind: input, shape index: {}]
  %s2 = inlined_call_operand.vmem [shape: f32[16,128], index: 2, kind: input, shape index: {}]
  %s3 = inlined_call_operand.hbm [shape: f32[400,128], index: 3, kind: input, shape index: {}]
  %s4 = inlined_call_operand.vmem [shape: f32[16,128], index: 4, kind: input, shape index: {}]
  %s5 = inlined_call_operand.vmem [shape: f32[128,32], index: 5, kind: input, shape index: {}]
  %s6 = inlined_call_operand.vmem [shape: f32[1,32], index: 6, kind: input, shape index: {}]
  %s7 = inlined_call_operand.vmem [shape: f32[32,256], index: 7, kind: input, shape index: {}]
  %s8 = inlined_call_operand.vmem [shape: f32[1,256], index: 8, kind: input, shape index: {}]
  %s9 = inlined_call_operand.hbm [shape: f32[2,16,128], index: 9, kind: output, shape index: {}]
  %s10 = sld [smem:[#allocation0]]
  $region73: #{tpu_custom_call.1} parent=0
    _
  %s12 = ssub.s32 1, %s10
  %s13 = scalar_select 0, %s12, %s10
  $region1: #{tpu_custom_call.1} parent=0
    #allocation4 [shape = 'u8[204800]{0}', space=vmem, size = 0x32000, scoped, tag = 'input window, operand 3, single buffered']
    #allocation5 [shape = 's32[2]{0}', space=sflag, size = 0x8, scoped, tag = 'scoped memory for tpu_custom_call.1']
    #allocation6 [shape = 's32[2]{0}', space=sflag, size = 0x8, scoped, tag = 'scoped memory for tpu_custom_call.1']
    #allocation7 [shape = 'u8[16384]{0}', space=vmem, size = 0x4000, scoped, tag = 'output window, operand 0']
    %14 = vsyncpa [#allocation5], 0
    %15 = vsyncpa [#allocation6], 0
    %s16 = scalar_lea.sflag [#allocation6], 1
    %17 = vsyncpa %s16, 0
    loop: start=0, step=1, limit=4
    $region2: #{tpu_custom_call.1} parent=1 // loop_pre_header
      _
    $region3: #{tpu_custom_call.1} parent=1 // loop_header
      %s19 = sphi 0, %s23
      %p20 = scmp.ge.s32.totalorder %s19, 4
      %s29 = sphi 0, %s31
      %s32 = sphi 0, %s29
      %s33 = sphi 0, %s32
      %s49 = sphi 0, %s33
      %s53 = sphi 0, %s53
      %s55 = sphi 0, %s53
      %s56 = sphi 0, %s55
      %s70 = sphi 0, %s56
      %s74 = sphi 0, %s74
      %s76 = sphi 0, %s74
      %s77 = sphi 0, %s76
      %s91 = sphi 0, %s77
      %s95 = sphi 0, %s95
      %s97 = sphi 0, %s95
      %s98 = sphi 0, %s97
      %s112 = sphi 0, %s98
      %s116 = sphi 0, %s116
      %s118 = sphi 0, %s116
      %s119 = sphi 0, %s118
      %s133 = sphi 0, %s119
      %s137 = sphi 0, %s137
      %s139 = sphi 0, %s137
      %s140 = sphi 0, %s139
      %s154 = sphi 0, %s140
      %s158 = sphi 0, %s158
      %s160 = sphi 0, %s158
      %s161 = sphi 0, %s160
      %s175 = sphi 0, %s161
      %s179 = sphi 0, %s179
      %s181 = sphi 0, %s179
      %s182 = sphi 0, %s181
      %s196 = sphi 0, %s182
      %s200 = sphi 0, %s200
      %s202 = sphi 0, %s200
      %s203 = sphi 0, %s202
      %s217 = sphi 0, %s203
      %s223 = sphi 0, %s225
      %s226 = sphi 0, %s223
      %s227 = sphi 0, %s226
      %s243 = sphi 0, %s227
    $region4: #{tpu_custom_call.1} parent=1 // loop_header_branch
      %22 = sbr.rel (%p20) target = $region8
    $region5: #{tpu_custom_call.1} parent=1 // loop_body
      %s24 = ssub.s32 %s19, 1
      %s25 = ssub.s32 %s19, 2
      %s26 = sadd.s32 %s19, 1
      %s27 = ssub.s32 %s19, %s26
      %p28 = scmp.eq.s32.totalorder %s27, 0
      %s30 = sadd.s32 %s29, 1
      %s31 = scalar_select %p28, %s29, %s30
      %p34 = pneg %p28
      %p35 = scmp.eq.s32.totalorder %s19, 1
      %p36 = por %p34, %p35
      %p37 = scmp.ne.s32.totalorder %s29, %s32
      %p38 = scmp.eq.s32.totalorder %s19, 0
      %p39 = por %p37, %p38
      %p40 = scmp.ne.s32.totalorder %s29, %s32
      %p41 = scmp.eq.s32.totalorder %s24, 1
      %p42 = por %p40, %p41
      %p43 = scmp.ne.s32.totalorder %s32, %s33
      %p44 = scmp.eq.s32.totalorder %s24, 0
      %p45 = por %p43, %p44
      %p46 = scmp.ne.s32.totalorder %s32, %s33
      %p47 = scmp.eq.s32.totalorder %s25, 1
      %p48 = por %p46, %p47
      %p50 = scmp.ne.s32.totalorder %s33, %s49
      %p51 = scmp.eq.s32.totalorder %s25, 0
      %p52 = por %p50, %p51
      %s54 = sadd.s32 %s53, 1
      %p57 = scmp.eq.s32.totalorder %s19, 1
      %p58 = scmp.ne.s32.totalorder %s53, %s55
      %p59 = scmp.eq.s32.totalorder %s19, 0
      %p60 = por %p58, %p59
      %p61 = scmp.ne.s32.totalorder %s53, %s55
      %p62 = scmp.eq.s32.totalorder %s24, 1
      %p63 = por %p61, %p62
      %p64 = scmp.ne.s32.totalorder %s55, %s56
      %p65 = scmp.eq.s32.totalorder %s24, 0
      %p66 = por %p64, %p65
      %p67 = scmp.ne.s32.totalorder %s55, %s56
      %p68 = scmp.eq.s32.totalorder %s25, 1
      %p69 = por %p67, %p68
      %p71 = scmp.ne.s32.totalorder %s56, %s70
      %p72 = scmp.eq.s32.totalorder %s25, 0
      %p73 = por %p71, %p72
      %s75 = sadd.s32 %s74, 1
      %p78 = scmp.eq.s32.totalorder %s19, 1
      %p79 = scmp.ne.s32.totalorder %s74, %s76
      %p80 = scmp.eq.s32.totalorder %s19, 0
      %p81 = por %p79, %p80
      %p82 = scmp.ne.s32.totalorder %s74, %s76
      %p83 = scmp.eq.s32.totalorder %s24, 1
      %p84 = por %p82, %p83
      %p85 = scmp.ne.s32.totalorder %s76, %s77
      %p86 = scmp.eq.s32.totalorder %s24, 0
      %p87 = por %p85, %p86
      %p88 = scmp.ne.s32.totalorder %s76, %s77
      %p89 = scmp.eq.s32.totalorder %s25, 1
      %p90 = por %p88, %p89
      %p92 = scmp.ne.s32.totalorder %s77, %s91
      %p93 = scmp.eq.s32.totalorder %s25, 0
      %p94 = por %p92, %p93
      %s96 = sadd.s32 %s95, 1
      %p99 = scmp.eq.s32.totalorder %s19, 1
      %p100 = scmp.ne.s32.totalorder %s95, %s97
      %p101 = scmp.eq.s32.totalorder %s19, 0
      %p102 = por %p100, %p101
      %p103 = scmp.ne.s32.totalorder %s95, %s97
      %p104 = scmp.eq.s32.totalorder %s24, 1
      %p105 = por %p103, %p104
      %p106 = scmp.ne.s32.totalorder %s97, %s98
      %p107 = scmp.eq.s32.totalorder %s24, 0
      %p108 = por %p106, %p107
      %p109 = scmp.ne.s32.totalorder %s97, %s98
      %p110 = scmp.eq.s32.totalorder %s25, 1
      %p111 = por %p109, %p110
      %p113 = scmp.ne.s32.totalorder %s98, %s112
      %p114 = scmp.eq.s32.totalorder %s25, 0
      %p115 = por %p113, %p114
      %s117 = sadd.s32 %s116, 1
      %p120 = scmp.eq.s32.totalorder %s19, 1
      %p121 = scmp.ne.s32.totalorder %s116, %s118
      %p122 = scmp.eq.s32.totalorder %s19, 0
      %p123 = por %p121, %p122
      %p124 = scmp.ne.s32.totalorder %s116, %s118
      %p125 = scmp.eq.s32.totalorder %s24, 1
      %p126 = por %p124, %p125
      %p127 = scmp.ne.s32.totalorder %s118, %s119
      %p128 = scmp.eq.s32.totalorder %s24, 0
      %p129 = por %p127, %p128
      %p130 = scmp.ne.s32.totalorder %s118, %s119
      %p131 = scmp.eq.s32.totalorder %s25, 1
      %p132 = por %p130, %p131
      %p134 = scmp.ne.s32.totalorder %s119, %s133
      %p135 = scmp.eq.s32.totalorder %s25, 0
      %p136 = por %p134, %p135
      %s138 = sadd.s32 %s137, 1
      %p141 = scmp.eq.s32.totalorder %s19, 1
      %p142 = scmp.ne.s32.totalorder %s137, %s139
      %p143 = scmp.eq.s32.totalorder %s19, 0
      %p144 = por %p142, %p143
      %p145 = scmp.ne.s32.totalorder %s137, %s139
      %p146 = scmp.eq.s32.totalorder %s24, 1
      %p147 = por %p145, %p146
      %p148 = scmp.ne.s32.totalorder %s139, %s140
      %p149 = scmp.eq.s32.totalorder %s24, 0
      %p150 = por %p148, %p149
      %p151 = scmp.ne.s32.totalorder %s139, %s140
      %p152 = scmp.eq.s32.totalorder %s25, 1
      %p153 = por %p151, %p152
      %p155 = scmp.ne.s32.totalorder %s140, %s154
      %p156 = scmp.eq.s32.totalorder %s25, 0
      %p157 = por %p155, %p156
      %s159 = sadd.s32 %s158, 1
      %p162 = scmp.eq.s32.totalorder %s19, 1
      %p163 = scmp.ne.s32.totalorder %s158, %s160
      %p164 = scmp.eq.s32.totalorder %s19, 0
      %p165 = por %p163, %p164
      %p166 = scmp.ne.s32.totalorder %s158, %s160
      %p167 = scmp.eq.s32.totalorder %s24, 1
      %p168 = por %p166, %p167
      %p169 = scmp.ne.s32.totalorder %s160, %s161
      %p170 = scmp.eq.s32.totalorder %s24, 0
      %p171 = por %p169, %p170
      %p172 = scmp.ne.s32.totalorder %s160, %s161
      %p173 = scmp.eq.s32.totalorder %s25, 1
      %p174 = por %p172, %p173
      %p176 = scmp.ne.s32.totalorder %s161, %s175
      %p177 = scmp.eq.s32.totalorder %s25, 0
      %p178 = por %p176, %p177
      %s180 = sadd.s32 %s179, 1
      %p183 = scmp.eq.s32.totalorder %s19, 1
      %p184 = scmp.ne.s32.totalorder %s179, %s181
      %p185 = scmp.eq.s32.totalorder %s19, 0
      %p186 = por %p184, %p185
      %p187 = scmp.ne.s32.totalorder %s179, %s181
      %p188 = scmp.eq.s32.totalorder %s24, 1
      %p189 = por %p187, %p188
      %p190 = scmp.ne.s32.totalorder %s181, %s182
      %p191 = scmp.eq.s32.totalorder %s24, 0
      %p192 = por %p190, %p191
      %p193 = scmp.ne.s32.totalorder %s181, %s182
      %p194 = scmp.eq.s32.totalorder %s25, 1
      %p195 = por %p193, %p194
      %p197 = scmp.ne.s32.totalorder %s182, %s196
      %p198 = scmp.eq.s32.totalorder %s25, 0
      %p199 = por %p197, %p198
      %s201 = sadd.s32 %s200, 1
      %p204 = scmp.eq.s32.totalorder %s19, 1
      %p205 = scmp.ne.s32.totalorder %s200, %s202
      %p206 = scmp.eq.s32.totalorder %s19, 0
      %p207 = por %p205, %p206
      %p208 = scmp.ne.s32.totalorder %s200, %s202
      %p209 = scmp.eq.s32.totalorder %s24, 1
      %p210 = por %p208, %p209
      %p211 = scmp.ne.s32.totalorder %s202, %s203
      %p212 = scmp.eq.s32.totalorder %s24, 0
      %p213 = por %p211, %p212
      %p214 = scmp.ne.s32.totalorder %s202, %s203
      %p215 = scmp.eq.s32.totalorder %s25, 1
      %p216 = por %p214, %p215
      %p218 = scmp.ne.s32.totalorder %s203, %s217
      %p219 = scmp.eq.s32.totalorder %s25, 0
      %p220 = por %p218, %p219
      %s221 = ssub.s32 %s19, %s26
      %p222 = scmp.eq.s32.totalorder %s221, 0
      %s224 = sadd.s32 %s223, 1
      %s225 = scalar_select %p222, %s223, %s224
      %p228 = pneg %p222
      %p229 = scmp.eq.s32.totalorder %s19, 1
      %p230 = por %p228, %p229
      %p231 = scmp.ne.s32.totalorder %s223, %s226
      %p232 = scmp.eq.s32.totalorder %s19, 0
      %p233 = por %p231, %p232
      %p234 = scmp.ne.s32.totalorder %s223, %s226
      %p235 = scmp.eq.s32.totalorder %s24, 1
      %p236 = por %p234, %p235
      %p237 = scmp.ne.s32.totalorder %s226, %s227
      %p238 = scmp.eq.s32.totalorder %s24, 0
      %p239 = por %p237, %p238
      %p240 = scmp.ne.s32.totalorder %s226, %s227
      %p241 = scmp.eq.s32.totalorder %s25, 1
      %p242 = por %p240, %p241
      %p244 = scmp.ne.s32.totalorder %s227, %s243
      %p245 = scmp.eq.s32.totalorder %s25, 0
      %p246 = por %p244, %p245
      %p247 = scmp.le.s32.totalorder 1, %s19
      %p248 = scmp.lt.s32.totalorder %s19, 3
      %p249 = pnand %p247, %p248
      %p250 = pneg %p249
      // Predicated region
      $region9: #{tpu_custom_call.1} parent=5 // pred_check
        _
      $region10: #{tpu_custom_call.1} parent=5 // pred_check_branch
        %252 = sbr.rel (%p249) target = $region12
      $region11: #{tpu_custom_call.1} parent=5 // pred_region
        %s253 = ssub.s32 %s19, 1
        // Predicated region
        $region13: #{tpu_custom_call.1} parent=11 // pred_check
          %p254 = pneg %p66
        $region14: #{tpu_custom_call.1} parent=11 // pred_check_branch
          %256 = sbr.rel (%p254) target = $region16
        $region15: #{tpu_custom_call.1} parent=11 // pred_region
          _
        $region16: #{tpu_custom_call.1} parent=11 // pred_fallthru
          _
        // Predicated region
        $region17: #{tpu_custom_call.1} parent=11 // pred_check
          %p257 = pneg %p87
        $region18: #{tpu_custom_call.1} parent=11 // pred_check_branch
          %259 = sbr.rel (%p257) target = $region20
        $region19: #{tpu_custom_call.1} parent=11 // pred_region
          _
        $region20: #{tpu_custom_call.1} parent=11 // pred_fallthru
          _
        // Predicated region
        $region21: #{tpu_custom_call.1} parent=11 // pred_check
          %p260 = pneg %p108
        $region22: #{tpu_custom_call.1} parent=11 // pred_check_branch
          %262 = sbr.rel (%p260) target = $region24
        $region23: #{tpu_custom_call.1} parent=11 // pred_region
          %s264 = ssub.s32 6400, 6400
          %265 = vsyncadd [#allocation5], %s264
          %s266 = sshll.u32 [#allocation4], 4
          %s267 = int_to_ptr.vmem [resolvable:$true] %s266
          %272 = dma.hbm_to_vmem [thread:$0]  %s3, 6400, %s267, [#allocation5], 128, 128, 8
        $region24: #{tpu_custom_call.1} parent=11 // pred_fallthru
          _
        // Predicated region
        $region25: #{tpu_custom_call.1} parent=11 // pred_check
          %p273 = pneg %p129
        $region26: #{tpu_custom_call.1} parent=11 // pred_check_branch
          %275 = sbr.rel (%p273) target = $region28
        $region27: #{tpu_custom_call.1} parent=11 // pred_region
          _
        $region28: #{tpu_custom_call.1} parent=11 // pred_fallthru
          _
        // Predicated region
        $region29: #{tpu_custom_call.1} parent=11 // pred_check
          %p276 = pneg %p150
        $region30: #{tpu_custom_call.1} parent=11 // pred_check_branch
          %278 = sbr.rel (%p276) target = $region32
        $region31: #{tpu_custom_call.1} parent=11 // pred_region
          _
        $region32: #{tpu_custom_call.1} parent=11 // pred_fallthru
          _
        // Predicated region
        $region33: #{tpu_custom_call.1} parent=11 // pred_check
          %p279 = pneg %p171
        $region34: #{tpu_custom_call.1} parent=11 // pred_check_branch
          %281 = sbr.rel (%p279) target = $region36
        $region35: #{tpu_custom_call.1} parent=11 // pred_region
          _
        $region36: #{tpu_custom_call.1} parent=11 // pred_fallthru
          _
        // Predicated region
        $region37: #{tpu_custom_call.1} parent=11 // pred_check
          %p282 = pneg %p192
        $region38: #{tpu_custom_call.1} parent=11 // pred_check_branch
          %284 = sbr.rel (%p282) target = $region40
        $region39: #{tpu_custom_call.1} parent=11 // pred_region
          _
        $region40: #{tpu_custom_call.1} parent=11 // pred_fallthru
          _
        // Predicated region
        $region41: #{tpu_custom_call.1} parent=11 // pred_check
          %p285 = pneg %p213
        $region42: #{tpu_custom_call.1} parent=11 // pred_check_branch
          %287 = sbr.rel (%p285) target = $region44
        $region43: #{tpu_custom_call.1} parent=11 // pred_region
          _
        $region44: #{tpu_custom_call.1} parent=11 // pred_fallthru
          _
      $region12: #{tpu_custom_call.1} parent=5 // pred_fallthru
        _
      %p288 = scmp.lt.s32.totalorder %s19, 2
      // Predicated region
      $region45: #{tpu_custom_call.1} parent=5 // pred_check
        %p289 = pneg %p288
      $region46: #{tpu_custom_call.1} parent=5 // pred_check_branch
        %291 = sbr.rel (%p289) target = $region48
      $region47: #{tpu_custom_call.1} parent=5 // pred_region
        // Predicated region
        $region49: #{tpu_custom_call.1} parent=47 // pred_check
          %p292 = pneg %p39
        $region50: #{tpu_custom_call.1} parent=47 // pred_check_branch
          %294 = sbr.rel (%p292) target = $region52
        $region51: #{tpu_custom_call.1} parent=47 // pred_region
          %p295 = scmp.lt.s32.totalorder %s19, 1
          %s296 = scalar_select %p295, %s19, 1
          %s297 = smul.addr %s296, 6
          %s298 = smul.addr %s297, 8
          %s299 = scalar_lea.vmem %s0, %s298
        $region52: #{tpu_custom_call.1} parent=47 // pred_fallthru
          _
      $region48: #{tpu_custom_call.1} parent=5 // pred_fallthru
        _
      %p300 = scmp.le.s32.totalorder 1, %s19
      %p301 = scmp.lt.s32.totalorder %s19, 3
      %p302 = pnand %p300, %p301
      %p303 = pneg %p302
      // Predicated region
      $region53: #{tpu_custom_call.1} parent=5 // pred_check
        _
      $region54: #{tpu_custom_call.1} parent=5 // pred_check_branch
        %305 = sbr.rel (%p302) target = $region56
      $region55: #{tpu_custom_call.1} parent=5 // pred_region
        %s306 = ssub.s32 %s19, 1
        // Predicated region
        $region57: #{tpu_custom_call.1} parent=55 // pred_check
          %p307 = pneg %p108
        $region58: #{tpu_custom_call.1} parent=55 // pred_check_branch
          %309 = sbr.rel (%p307) target = $region60
        $region59: #{tpu_custom_call.1} parent=55 // pred_region
          %310 = dma.done [#allocation5], 6400
        $region60: #{tpu_custom_call.1} parent=55 // pred_fallthru
          _
        %p311 = scmp.lt.s32.totalorder %s24, 1
        %s312 = scalar_select %p311, %s24, 1
        %s313 = smul.addr %s312, 6
        %s314 = smul.addr %s313, 8
        %s315 = scalar_lea.vmem %s0, %s314
        %p316 = pneg %p45
        %p317 = pneg %p42
        %p318 = pneg %p66
        %p319 = pneg %p63
        %p320 = pneg %p87
        %p321 = pneg %p84
        %p322 = pneg %p108
        %p323 = pneg %p105
        %p324 = pneg %p129
        %p325 = pneg %p126
        %p326 = pneg %p150
        %p327 = pneg %p147
        %p328 = pneg %p171
        %p329 = pneg %p168
        %p330 = pneg %p192
        %p331 = pneg %p189
        %p332 = pneg %p213
        %p333 = pneg %p210
        %p334 = pneg %p239
        %p335 = pneg %p236
        %s336 = sand.u32 %s226, 1
        %s337 = scalar_lea.sflag [#allocation6], %s336
        %s338 = sand.u32 %s226, 1
        %s339 = smul.addr %s338, 16
        %s340 = scalar_lea.vmem [#allocation7], %s339
        %p341 = scmp.lt.s32.totalorder %s24, 1
        %s342 = scalar_select %p341, %s24, 1
        %s343 = smul.addr %s342, 6
        %s344 = smul.addr %s343, 8
        %s345 = scalar_lea.vmem %s0, %s344
        %v346 = vld [vmem:[%s345] sm:$0xff]
        %v347 = vld [vmem:[%s345 + $0x8] sm:$0xff]
        %v348 = vld [vmem:[%s345 + $0x10] sm:$0xff]
        %v349 = vld [vmem:[%s345 + $0x18] sm:$0xff]
        %v350 = vld [vmem:[%s345 + $0x20] sm:$0xf]
        %v351 = vld [vmem:[%s345 + $0x28] sm:$0xf]
        %352 = vst [vmem:[#allocation2] sm:$0xff] %v346
        %353 = vst [vmem:[#allocation2 + $0x8] sm:$0xff] %v348
        %354 = vst [vmem:[#allocation2 + $0x10] sm:$0xf] %v350
        %361 = vrot.lane.b32.xlu0 %v346, 120
        %v362 = vpop.permute.xlu0 %361
        %363 = vrot.lane.b32.xlu0 %v347, 120
        %v364 = vpop.permute.xlu0 %363
        %365 = vrot.lane.b32.xlu0 %v348, 120
        %v366 = vpop.permute.xlu0 %365
        %367 = vrot.lane.b32.xlu0 %v349, 120
        %v368 = vpop.permute.xlu0 %367
        %369 = vrot.lane.b32.xlu0 %v350, 120
        %v370 = vpop.permute.xlu0 %369
        %371 = vrot.lane.b32.xlu0 %v351, 120
        %v372 = vpop.permute.xlu0 %371
        %vm373 = vcmask 982016
        %v374 = vsel %vm373, %v362, %v364
        %v375 = vsel %vm373, %v366, %v368
        %v376 = vsel %vm373, %v370, %v372
        %s380 = scalar_lea.vmem [#allocation2], 24
        %381 = vst [vmem:[%s380] sm:$0xff] %v374
        %382 = vst [vmem:[%s380 + $0x8] sm:$0xff] %v375
        %383 = vst [vmem:[%s380 + $0x10] sm:$0xf] %v376
        %384 = vrot.lane.b32.xlu0 %v346, 112
        %v385 = vpop.permute.xlu0 %384
        %386 = vrot.lane.b32.xlu0 %v347, 112
        %v387 = vpop.permute.xlu0 %386
        %388 = vrot.lane.b32.xlu0 %v348, 112
        %v389 = vpop.permute.xlu0 %388
        %390 = vrot.lane.b32.xlu0 %v349, 112
        %v391 = vpop.permute.xlu0 %390
        %392 = vrot.lane.b32.xlu0 %v350, 112
        %v393 = vpop.permute.xlu0 %392
        %394 = vrot.lane.b32.xlu0 %v351, 112
        %v395 = vpop.permute.xlu0 %394
        %vm396 = vcmask 916480
        %v397 = vsel %vm396, %v385, %v387
        %v398 = vsel %vm396, %v389, %v391
        %v399 = vsel %vm396, %v393, %v395
        %s403 = scalar_lea.vmem [#allocation2], 48
        %404 = vst [vmem:[%s403] sm:$0xff] %v397
        %405 = vst [vmem:[%s403 + $0x8] sm:$0xff] %v398
        %406 = vst [vmem:[%s403 + $0x10] sm:$0xf] %v399
        %407 = vrot.lane.b32.xlu0 %v346, 104
        %v408 = vpop.permute.xlu0 %407
        %409 = vrot.lane.b32.xlu0 %v347, 104
        %v410 = vpop.permute.xlu0 %409
        %411 = vrot.lane.b32.xlu0 %v348, 104
        %v412 = vpop.permute.xlu0 %411
        %413 = vrot.lane.b32.xlu0 %v349, 104
        %v414 = vpop.permute.xlu0 %413
        %415 = vrot.lane.b32.xlu0 %v350, 104
        %v416 = vpop.permute.xlu0 %415
        %417 = vrot.lane.b32.xlu0 %v351, 104
        %v418 = vpop.permute.xlu0 %417
        %vm419 = vcmask 850944
        %v420 = vsel %vm419, %v408, %v410
        %v421 = vsel %vm419, %v412, %v414
        %v422 = vsel %vm419, %v416, %v418
        %s426 = scalar_lea.vmem [#allocation2], 72
        %427 = vst [vmem:[%s426] sm:$0xff] %v420
        %428 = vst [vmem:[%s426 + $0x8] sm:$0xff] %v421
        %429 = vst [vmem:[%s426 + $0x10] sm:$0xf] %v422
        %430 = vrot.lane.b32.xlu0 %v346, 96
        %v431 = vpop.permute.xlu0 %430
        %432 = vrot.lane.b32.xlu0 %v347, 96
        %v433 = vpop.permute.xlu0 %432
        %434 = vrot.lane.b32.xlu0 %v348, 96
        %v435 = vpop.permute.xlu0 %434
        %436 = vrot.lane.b32.xlu0 %v349, 96
        %v437 = vpop.permute.xlu0 %436
        %438 = vrot.lane.b32.xlu0 %v350, 96
        %v439 = vpop.permute.xlu0 %438
        %440 = vrot.lane.b32.xlu0 %v351, 96
        %v441 = vpop.permute.xlu0 %440
        %vm442 = vcmask 785408
        %v443 = vsel %vm442, %v431, %v433
        %v444 = vsel %vm442, %v435, %v437
        %v445 = vsel %vm442, %v439, %v441
        %s449 = scalar_lea.vmem [#allocation2], 96
        %450 = vst [vmem:[%s449] sm:$0xff] %v443
        %451 = vst [vmem:[%s449 + $0x8] sm:$0xff] %v444
        %452 = vst [vmem:[%s449 + $0x10] sm:$0xf] %v445
        %v453 = vld [vmem:[#allocation2] sm:$0xff]
        %v454 = vld [vmem:[#allocation2 + $0x8] sm:$0xff]
        %v455 = vld [vmem:[#allocation4] sm:$0xff]
        %v456 = vld [vmem:[#allocation4 + $0x8] sm:$0xff]
        %v457 = vmul.f32 %v453, %v455
        %v458 = vmul.f32 %v454, %v456
        %v459 = vld [vmem:[%s380] sm:$0xff]
        %v460 = vld [vmem:[%s380 + $0x8] sm:$0xff]
        %v461 = vld [vmem:[#allocation4 + $0x10] sm:$0xff]
        %v462 = vld [vmem:[#allocation4 + $0x18] sm:$0xff]
        %v463 = vmul.f32 %v459, %v461
        %v464 = vmul.f32 %v460, %v462
        %v465 = vadd.f32 %v457, %v463
        %v466 = vadd.f32 %v458, %v464
        %v467 = vld [vmem:[%s403] sm:$0xff]
        %v468 = vld [vmem:[%s403 + $0x8] sm:$0xff]
        %v469 = vld [vmem:[#allocation4 + $0x20] sm:$0xff]
        %v470 = vld [vmem:[#allocation4 + $0x28] sm:$0xff]
        %v471 = vmul.f32 %v467, %v469
        %v472 = vmul.f32 %v468, %v470
        %v473 = vadd.f32 %v465, %v471
        %v474 = vadd.f32 %v466, %v472
        %v475 = vld [vmem:[%s426] sm:$0xff]
        %v476 = vld [vmem:[%s426 + $0x8] sm:$0xff]
        %v477 = vld [vmem:[#allocation4 + $0x30] sm:$0xff]
        %v478 = vld [vmem:[#allocation4 + $0x38] sm:$0xff]
        %v479 = vmul.f32 %v475, %v477
        %v480 = vmul.f32 %v476, %v478
        %v481 = vadd.f32 %v473, %v479
        %v482 = vadd.f32 %v474, %v480
        %v483 = vld [vmem:[%s449] sm:$0xff]
        %v484 = vld [vmem:[%s449 + $0x8] sm:$0xff]
        %v485 = vld [vmem:[#allocation4 + $0x40] sm:$0xff]
        %v486 = vld [vmem:[#allocation4 + $0x48] sm:$0xff]
        %v487 = vmul.f32 %v483, %v485
        %v488 = vmul.f32 %v484, %v486
        %v489 = vadd.f32 %v481, %v487
        %v490 = vadd.f32 %v482, %v488
        %v491 = vld [vmem:[#allocation2 + $0x1] sm:$0xff]
        %v492 = vld [vmem:[#allocation2 + $0x9] sm:$0xff]
        %v493 = vld [vmem:[#allocation4 + $0x50] sm:$0xff]
        %v494 = vld [vmem:[#allocation4 + $0x58] sm:$0xff]
        %v495 = vmul.f32 %v491, %v493
        %v496 = vmul.f32 %v492, %v494
        %v497 = vadd.f32 %v489, %v495
        %v498 = vadd.f32 %v490, %v496
        %v499 = vld [vmem:[%s380 + $0x1] sm:$0xff]
        %v500 = vld [vmem:[%s380 + $0x9] sm:$0xff]
        %v501 = vld [vmem:[#allocation4 + $0x60] sm:$0xff]
        %v502 = vld [vmem:[#allocation4 + $0x68] sm:$0xff]
        %v503 = vmul.f32 %v499, %v501
        %v504 = vmul.f32 %v500, %v502
        %v505 = vadd.f32 %v497, %v503
        %v506 = vadd.f32 %v498, %v504
        %v507 = vld [vmem:[%s1] sm:$0xff]
        %v508 = vld [vmem:[%s1 + $0x8] sm:$0xff]
        %v509 = vmul.f32 %v499, %v507
        %v510 = vmul.f32 %v500, %v508
        %v511 = vld [vmem:[%s403 + $0x1] sm:$0xff]
        %v512 = vld [vmem:[%s403 + $0x9] sm:$0xff]
        %v513 = vld [vmem:[#allocation4 + $0x70] sm:$0xff]
        %v514 = vld [vmem:[#allocation4 + $0x78] sm:$0xff]
        %v515 = vmul.f32 %v511, %v513
        %v516 = vmul.f32 %v512, %v514
        %v517 = vadd.f32 %v505, %v515
        %v518 = vadd.f32 %v506, %v516
        %v519 = vld [vmem:[%s1 + $0x10] sm:$0xff]
        %v520 = vld [vmem:[%s1 + $0x18] sm:$0xff]
        %v521 = vmul.f32 %v511, %v519
        %v522 = vmul.f32 %v512, %v520
        %v523 = vadd.f32 %v509, %v521
        %v524 = vadd.f32 %v510, %v522
        %v525 = vld [vmem:[%s426 + $0x1] sm:$0xff]
        %v526 = vld [vmem:[%s426 + $0x9] sm:$0xff]
        %v527 = vld [vmem:[#allocation4 + $0x80] sm:$0xff]
        %v528 = vld [vmem:[#allocation4 + $0x88] sm:$0xff]
        %v529 = vmul.f32 %v525, %v527
        %v530 = vmul.f32 %v526, %v528
        %v531 = vadd.f32 %v517, %v529
        %v532 = vadd.f32 %v518, %v530
        %v533 = vld [vmem:[%s1 + $0x20] sm:$0xff]
        %v534 = vld [vmem:[%s1 + $0x28] sm:$0xff]
        %v535 = vmul.f32 %v525, %v533
        %v536 = vmul.f32 %v526, %v534
        %v537 = vadd.f32 %v523, %v535
        %v538 = vadd.f32 %v524, %v536
        %v539 = vld [vmem:[%s449 + $0x1] sm:$0xff]
        %v540 = vld [vmem:[%s449 + $0x9] sm:$0xff]
        %v541 = vld [vmem:[#allocation4 + $0x90] sm:$0xff]
        %v542 = vld [vmem:[#allocation4 + $0x98] sm:$0xff]
        %v543 = vmul.f32 %v539, %v541
        %v544 = vmul.f32 %v540, %v542
        %v545 = vadd.f32 %v531, %v543
        %v546 = vadd.f32 %v532, %v544
        %v547 = vld [vmem:[#allocation2 + $0x2] sm:$0xff]
        %v548 = vld [vmem:[#allocation2 + $0xa] sm:$0xff]
        %v549 = vld [vmem:[#allocation4 + $0xa0] sm:$0xff]
        %v550 = vld [vmem:[#allocation4 + $0xa8] sm:$0xff]
        %v551 = vmul.f32 %v547, %v549
        %v552 = vmul.f32 %v548, %v550
        %v553 = vadd.f32 %v545, %v551
        %v554 = vadd.f32 %v546, %v552
        %v555 = vld [vmem:[%s380 + $0x2] sm:$0xff]
        %v556 = vld [vmem:[%s380 + $0xa] sm:$0xff]
        %v557 = vld [vmem:[#allocation4 + $0xb0] sm:$0xff]
        %v558 = vld [vmem:[#allocation4 + $0xb8] sm:$0xff]
        %v559 = vmul.f32 %v555, %v557
        %v560 = vmul.f32 %v556, %v558
        %v561 = vadd.f32 %v553, %v559
        %v562 = vadd.f32 %v554, %v560
        %v563 = vld [vmem:[%s1 + $0x30] sm:$0xff]
        %v564 = vld [vmem:[%s1 + $0x38] sm:$0xff]
        %v565 = vmul.f32 %v555, %v563
        %v566 = vmul.f32 %v556, %v564
        %v567 = vadd.f32 %v537, %v565
        %v568 = vadd.f32 %v538, %v566
        %v569 = vld [vmem:[%s403 + $0x2] sm:$0xff]
        %v570 = vld [vmem:[%s403 + $0xa] sm:$0xff]
        %v571 = vld [vmem:[#allocation4 + $0xc0] sm:$0xff]
        %v572 = vld [vmem:[#allocation4 + $0xc8] sm:$0xff]
        %v573 = vmul.f32 %v569, %v571
        %v574 = vmul.f32 %v570, %v572
        %v575 = vadd.f32 %v561, %v573
        %v576 = vadd.f32 %v562, %v574
        %v577 = vld [vmem:[%s1 + $0x40] sm:$0xff]
        %v578 = vld [vmem:[%s1 + $0x48] sm:$0xff]
        %v579 = vmul.f32 %v569, %v577
        %v580 = vmul.f32 %v570, %v578
        %v581 = vadd.f32 %v567, %v579
        %v582 = vadd.f32 %v568, %v580
        %v583 = vld [vmem:[%s426 + $0x2] sm:$0xff]
        %v584 = vld [vmem:[%s426 + $0xa] sm:$0xff]
        %v585 = vld [vmem:[#allocation4 + $0xd0] sm:$0xff]
        %v586 = vld [vmem:[#allocation4 + $0xd8] sm:$0xff]
        %v587 = vmul.f32 %v583, %v585
        %v588 = vmul.f32 %v584, %v586
        %v589 = vadd.f32 %v575, %v587
        %v590 = vadd.f32 %v576, %v588
        %v591 = vld [vmem:[%s1 + $0x50] sm:$0xff]
        %v592 = vld [vmem:[%s1 + $0x58] sm:$0xff]
        %v593 = vmul.f32 %v583, %v591
        %v594 = vmul.f32 %v584, %v592
        %v595 = vadd.f32 %v581, %v593
        %v596 = vadd.f32 %v582, %v594
        %v597 = vld [vmem:[%s449 + $0x2] sm:$0xff]
        %v598 = vld [vmem:[%s449 + $0xa] sm:$0xff]
        %v599 = vld [vmem:[#allocation4 + $0xe0] sm:$0xff]
        %v600 = vld [vmem:[#allocation4 + $0xe8] sm:$0xff]
        %v601 = vmul.f32 %v597, %v599
        %v602 = vmul.f32 %v598, %v600
        %v603 = vadd.f32 %v589, %v601
        %v604 = vadd.f32 %v590, %v602
        %v605 = vld [vmem:[#allocation2 + $0x3] sm:$0xff]
        %v606 = vld [vmem:[#allocation2 + $0xb] sm:$0xff]
        %v607 = vld [vmem:[#allocation4 + $0xf0] sm:$0xff]
        %v608 = vld [vmem:[#allocation4 + $0xf8] sm:$0xff]
        %v609 = vmul.f32 %v605, %v607
        %v610 = vmul.f32 %v606, %v608
        %v611 = vadd.f32 %v603, %v609
        %v612 = vadd.f32 %v604, %v610
        %v613 = vld [vmem:[%s380 + $0x3] sm:$0xff]
        %v614 = vld [vmem:[%s380 + $0xb] sm:$0xff]
        %v615 = vld [vmem:[#allocation4 + $0x100] sm:$0xff]
        %v616 = vld [vmem:[#allocation4 + $0x108] sm:$0xff]
        %v617 = vmul.f32 %v613, %v615
        %v618 = vmul.f32 %v614, %v616
        %v619 = vadd.f32 %v611, %v617
        %v620 = vadd.f32 %v612, %v618
        %v621 = vld [vmem:[%s1 + $0x60] sm:$0xff]
        %v622 = vld [vmem:[%s1 + $0x68] sm:$0xff]
        %v623 = vmul.f32 %v613, %v621
        %v624 = vmul.f32 %v614, %v622
        %v625 = vadd.f32 %v595, %v623
        %v626 = vadd.f32 %v596, %v624
        %v627 = vld [vmem:[%s403 + $0x3] sm:$0xff]
        %v628 = vld [vmem:[%s403 + $0xb] sm:$0xff]
        %v629 = vld [vmem:[#allocation4 + $0x110] sm:$0xff]
        %v630 = vld [vmem:[#allocation4 + $0x118] sm:$0xff]
        %v631 = vmul.f32 %v627, %v629
        %v632 = vmul.f32 %v628, %v630
        %v633 = vadd.f32 %v619, %v631
        %v634 = vadd.f32 %v620, %v632
        %v635 = vld [vmem:[%s1 + $0x70] sm:$0xff]
        %v636 = vld [vmem:[%s1 + $0x78] sm:$0xff]
        %v637 = vmul.f32 %v627, %v635
        %v638 = vmul.f32 %v628, %v636
        %v639 = vadd.f32 %v625, %v637
        %v640 = vadd.f32 %v626, %v638
        %v641 = vld [vmem:[%s426 + $0x3] sm:$0xff]
        %v642 = vld [vmem:[%s426 + $0xb] sm:$0xff]
        %v643 = vld [vmem:[#allocation4 + $0x120] sm:$0xff]
        %v644 = vld [vmem:[#allocation4 + $0x128] sm:$0xff]
        %v645 = vmul.f32 %v641, %v643
        %v646 = vmul.f32 %v642, %v644
        %v647 = vadd.f32 %v633, %v645
        %v648 = vadd.f32 %v634, %v646
        %v649 = vld [vmem:[%s1 + $0x80] sm:$0xff]
        %v650 = vld [vmem:[%s1 + $0x88] sm:$0xff]
        %v651 = vmul.f32 %v641, %v649
        %v652 = vmul.f32 %v642, %v650
        %v653 = vadd.f32 %v639, %v651
        %v654 = vadd.f32 %v640, %v652
        %v655 = vld [vmem:[%s449 + $0x3] sm:$0xff]
        %v656 = vld [vmem:[%s449 + $0xb] sm:$0xff]
        %v657 = vld [vmem:[#allocation4 + $0x130] sm:$0xff]
        %v658 = vld [vmem:[#allocation4 + $0x138] sm:$0xff]
        %v659 = vmul.f32 %v655, %v657
        %v660 = vmul.f32 %v656, %v658
        %v661 = vadd.f32 %v647, %v659
        %v662 = vadd.f32 %v648, %v660
        %v663 = vld [vmem:[#allocation2 + $0x4] sm:$0xff]
        %v664 = vld [vmem:[#allocation2 + $0xc] sm:$0xff]
        %v665 = vld [vmem:[#allocation4 + $0x140] sm:$0xff]
        %v666 = vld [vmem:[#allocation4 + $0x148] sm:$0xff]
        %v667 = vmul.f32 %v663, %v665
        %v668 = vmul.f32 %v664, %v666
        %v669 = vadd.f32 %v661, %v667
        %v670 = vadd.f32 %v662, %v668
        %v671 = vld [vmem:[%s380 + $0x4] sm:$0xff]
        %v672 = vld [vmem:[%s380 + $0xc] sm:$0xff]
        %v673 = vld [vmem:[#allocation4 + $0x150] sm:$0xff]
        %v674 = vld [vmem:[#allocation4 + $0x158] sm:$0xff]
        %v675 = vmul.f32 %v671, %v673
        %v676 = vmul.f32 %v672, %v674
        %v677 = vadd.f32 %v669, %v675
        %v678 = vadd.f32 %v670, %v676
        %v679 = vld [vmem:[%s403 + $0x4] sm:$0xff]
        %v680 = vld [vmem:[%s403 + $0xc] sm:$0xff]
        %v681 = vld [vmem:[#allocation4 + $0x160] sm:$0xff]
        %v682 = vld [vmem:[#allocation4 + $0x168] sm:$0xff]
        %v683 = vmul.f32 %v679, %v681
        %v684 = vmul.f32 %v680, %v682
        %v685 = vadd.f32 %v677, %v683
        %v686 = vadd.f32 %v678, %v684
        %v687 = vld [vmem:[%s426 + $0x4] sm:$0xff]
        %v688 = vld [vmem:[%s426 + $0xc] sm:$0xff]
        %v689 = vld [vmem:[#allocation4 + $0x170] sm:$0xff]
        %v690 = vld [vmem:[#allocation4 + $0x178] sm:$0xff]
        %v691 = vmul.f32 %v687, %v689
        %v692 = vmul.f32 %v688, %v690
        %v693 = vadd.f32 %v685, %v691
        %v694 = vadd.f32 %v686, %v692
        %v695 = vld [vmem:[%s449 + $0x4] sm:$0xff]
        %v696 = vld [vmem:[%s449 + $0xc] sm:$0xff]
        %v697 = vld [vmem:[#allocation4 + $0x180] sm:$0xff]
        %v698 = vld [vmem:[#allocation4 + $0x188] sm:$0xff]
        %v699 = vmul.f32 %v695, %v697
        %v700 = vmul.f32 %v696, %v698
        %v701 = vadd.f32 %v693, %v699
        %v702 = vadd.f32 %v694, %v700
        %v703 = vld [vmem:[%s2] sm:$0xff]
        %v704 = vld [vmem:[%s2 + $0x8] sm:$0xff]
        %v705 = vadd.f32 %v653, %v703
        %v706 = vadd.f32 %v654, %v704
        %v707 = vmax.f32 %v705, 0.0
        %v708 = vmax.f32 %v706, 0.0
        %v709 = vld [vmem:[%s4] sm:$0xff]
        %v710 = vld [vmem:[%s4 + $0x8] sm:$0xff]
        %v711 = vadd.f32 %v701, %v709
        %v712 = vadd.f32 %v702, %v710
        %v713 = vmax.f32 %v711, 0.0
        %v714 = vmax.f32 %v712, 0.0
        %715 = vst [vmem:[#allocation3] sm:$0xff] %v707
        %716 = vst [vmem:[#allocation3 + $0x8] sm:$0xff] %v708
        %s717 = scalar_lea.vmem [#allocation3], 16
        %718 = vst [vmem:[%s717] sm:$0xff] %v713
        %719 = vst [vmem:[%s717 + $0x8] sm:$0xff] %v714
        %v720 = vadd.f32 %v707, %v713
        %v721 = vadd.f32 %v708, %v714
        %v722 = vadd.f32 %v720, %v721
        %v723 = vrot.slane %v722, 4
        %v724 = vadd.f32 %v722, %v723
        %v725 = vrot.slane %v724, 2
        %v726 = vadd.f32 %v724, %v725
        %v727 = vrot.slane %v726, 1
        %v728 = vadd.f32 %v726, %v727
        %v729 = vmul.f32 %v728, 0.00390625
        %v730 = vld [vmem:[%s5] sm:$0xff]
        %v731 = vld [vmem:[%s5 + $0x8] sm:$0xff]
        %v732 = vld [vmem:[%s5 + $0x10] sm:$0xff]
        %v733 = vld [vmem:[%s5 + $0x18] sm:$0xff]
        %v734 = vld [vmem:[%s5 + $0x20] sm:$0xff]
        %v735 = vld [vmem:[%s5 + $0x28] sm:$0xff]
        %v736 = vld [vmem:[%s5 + $0x30] sm:$0xff]
        %v737 = vld [vmem:[%s5 + $0x38] sm:$0xff]
        %v738 = vld [vmem:[%s5 + $0x40] sm:$0xff]
        %v739 = vld [vmem:[%s5 + $0x48] sm:$0xff]
        %v740 = vld [vmem:[%s5 + $0x50] sm:$0xff]
        %v741 = vld [vmem:[%s5 + $0x58] sm:$0xff]
        %v742 = vld [vmem:[%s5 + $0x60] sm:$0xff]
        %v743 = vld [vmem:[%s5 + $0x68] sm:$0xff]
        %v744 = vld [vmem:[%s5 + $0x70] sm:$0xff]
        %v745 = vld [vmem:[%s5 + $0x78] sm:$0xff]
        %v746 = vld [vmem:[%s6] sm:$0x1]
        %747 = vmatprep.subr.mxu0 0.0
        %748 = vmatpush1.msra.mxu0 %v745
        %749 = vmatprep.subr.mxu0 0.0
        %750 = vmatpush1.msra.mxu0 %v744
        %751 = vmatprep.subr.mxu0 0.0
        %752 = vmatpush1.msra.mxu0 %v743
        %753 = vmatprep.subr.mxu0 0.0
        %754 = vmatpush1.msra.mxu0 %v742
        %755 = vmatprep.subr.mxu0 0.0
        %756 = vmatpush1.msra.mxu0 %v741
        %757 = vmatprep.subr.mxu0 0.0
        %758 = vmatpush1.msra.mxu0 %v740
        %759 = vmatprep.subr.mxu0 0.0
        %760 = vmatpush1.msra.mxu0 %v739
        %761 = vmatprep.subr.mxu0 0.0
        %762 = vmatpush1.msra.mxu0 %v738
        %763 = vmatprep.subr.mxu0 0.0
        %764 = vmatpush1.msra.mxu0 %v737
        %765 = vmatprep.subr.mxu0 0.0
        %766 = vmatpush1.msra.mxu0 %v736
        %767 = vmatprep.subr.mxu0 0.0
        %768 = vmatpush1.msra.mxu0 %v735
        %769 = vmatprep.subr.mxu0 0.0
        %770 = vmatpush1.msra.mxu0 %v734
        %771 = vmatprep.subr.mxu0 0.0
        %772 = vmatpush1.msra.mxu0 %v733
        %773 = vmatprep.subr.mxu0 0.0
        %774 = vmatpush1.msra.mxu0 %v732
        %775 = vmatprep.subr.mxu0 0.0
        %776 = vmatpush1.msra.mxu0 %v731
        %777 = vmatprep.subr.mxu0 0.0
        %778 = vmatpush1.msra.mxu0 %v730
        %779 = vmatprep.subr.mxu0 0.0
        %780 = vmatpush2.msra.mxu0 0.0
        %781 = vmatprep.subr.mxu0 0.0
        %782 = vmatpush2.msra.mxu0 0.0
        %783 = vmatprep.subr.mxu0 0.0
        %784 = vmatpush2.msra.mxu0 0.0
        %785 = vmatprep.subr.mxu0 0.0
        %786 = vmatpush2.msra.mxu0 0.0
        %787 = vmatprep.subr.mxu0 0.0
        %788 = vmatpush2.msra.mxu0 0.0
        %789 = vmatprep.subr.mxu0 0.0
        %790 = vmatpush2.msra.mxu0 0.0
        %791 = vmatprep.subr.mxu0 0.0
        %792 = vmatpush2.msra.mxu0 0.0
        %793 = vmatprep.subr.mxu0 0.0
        %794 = vmatpush2.msra.mxu0 0.0
        %795 = vmatprep.subr.mxu0 0.0
        %796 = vmatpush2.msra.mxu0 0.0
        %797 = vmatprep.subr.mxu0 0.0
        %798 = vmatpush2.msra.mxu0 0.0
        %799 = vmatprep.subr.mxu0 0.0
        %800 = vmatpush2.msra.mxu0 0.0
        %801 = vmatprep.subr.mxu0 0.0
        %802 = vmatpush2.msra.mxu0 0.0
        %803 = vmatprep.subr.mxu0 0.0
        %804 = vmatpush2.msra.mxu0 0.0
        %805 = vmatprep.subr.mxu0 0.0
        %806 = vmatpush2.msra.mxu0 0.0
        %807 = vmatprep.subr.mxu0 0.0
        %808 = vmatpush2.msra.mxu0 0.0
        %809 = vmatprep.subr.mxu0 0.0
        %810 = vmatpush2.msra.mxu0 0.0
        %811 = vmatprep.mubr.f32.mxu0 0.0
        %812 = vmatmul.mubr.f32.gmra.mxu0 %v729
        %v813 = vpop.f32.mrf.mxu0
        %v814 = vadd.f32 %v746, %v813
        %v815 = vpop.f32.mrf.mxu0
        %816 = vdwg.mxu0
        %v817 = vmax.f32 %v814, 0.0
        %v818 = vld [vmem:[%s7] sm:$0xff]
        %v819 = vld [vmem:[%s7 + $0x8] sm:$0xff]
        %v820 = vld [vmem:[%s7 + $0x10] sm:$0xff]
        %v821 = vld [vmem:[%s7 + $0x18] sm:$0xff]
        %v822 = vld [vmem:[%s7 + $0x20] sm:$0xff]
        %v823 = vld [vmem:[%s7 + $0x28] sm:$0xff]
        %v824 = vld [vmem:[%s7 + $0x30] sm:$0xff]
        %v825 = vld [vmem:[%s7 + $0x38] sm:$0xff]
        %v826 = vld [vmem:[%s8] sm:$0x3]
        %v828 = vlaneseq
        %v829 = vshrl.u32 %v828, 7
        %v830 = vsub.s32 0, %v829
        %v831 = vrot.slane %v826, %v830
        %v832 = vlaneseq
        %v833 = vshrl.u32 %v832, 7
        %v834 = vsub.s32 1, %v833
        %v835 = vrot.slane %v826, %v834
        %vm838 = vcmask 261120
        %v840 = vsel %vm838, %v817, 0
        %842 = vmatprep.subr.mxu0 0.0
        %843 = vmatpush1.msra.mxu0 0.0
        %844 = vmatprep.subr.mxu0 0.0
        %845 = vmatpush1.msra.mxu0 0.0
        %846 = vmatprep.subr.mxu0 0.0
        %847 = vmatpush1.msra.mxu0 0.0
        %848 = vmatprep.subr.mxu0 0.0
        %849 = vmatpush1.msra.mxu0 0.0
        %850 = vmatprep.subr.mxu0 0.0
        %851 = vmatpush1.msra.mxu0 0.0
        %852 = vmatprep.subr.mxu0 0.0
        %853 = vmatpush1.msra.mxu0 0.0
        %854 = vmatprep.subr.mxu0 0.0
        %855 = vmatpush1.msra.mxu0 0.0
        %856 = vmatprep.subr.mxu0 0.0
        %857 = vmatpush1.msra.mxu0 0.0
        %858 = vmatprep.subr.mxu0 0.0
        %859 = vmatpush1.msra.mxu0 0.0
        %860 = vmatprep.subr.mxu0 0.0
        %861 = vmatpush1.msra.mxu0 0.0
        %862 = vmatprep.subr.mxu0 0.0
        %863 = vmatpush1.msra.mxu0 0.0
        %864 = vmatprep.subr.mxu0 0.0
        %865 = vmatpush1.msra.mxu0 0.0
        %866 = vmatprep.subr.mxu0 %v825
        %867 = vmatpush1.msra.mxu0 %v824
        %868 = vmatprep.subr.mxu0 %v823
        %869 = vmatpush1.msra.mxu0 %v822
        %870 = vmatprep.subr.mxu0 %v821
        %871 = vmatpush1.msra.mxu0 %v820
        %872 = vmatprep.subr.mxu0 %v819
        %873 = vmatpush1.msra.mxu0 %v818
        %874 = vmatprep.subr.mxu0 0.0
        %875 = vmatpush2.msra.mxu0 0.0
        %876 = vmatprep.subr.mxu0 0.0
        %877 = vmatpush2.msra.mxu0 0.0
        %878 = vmatprep.subr.mxu0 0.0
        %879 = vmatpush2.msra.mxu0 0.0
        %880 = vmatprep.subr.mxu0 0.0
        %881 = vmatpush2.msra.mxu0 0.0
        %882 = vmatprep.subr.mxu0 0.0
        %883 = vmatpush2.msra.mxu0 0.0
        %884 = vmatprep.subr.mxu0 0.0
        %885 = vmatpush2.msra.mxu0 0.0
        %886 = vmatprep.subr.mxu0 0.0
        %887 = vmatpush2.msra.mxu0 0.0
        %888 = vmatprep.subr.mxu0 0.0
        %889 = vmatpush2.msra.mxu0 0.0
        %890 = vmatprep.subr.mxu0 0.0
        %891 = vmatpush2.msra.mxu0 0.0
        %892 = vmatprep.subr.mxu0 0.0
        %893 = vmatpush2.msra.mxu0 0.0
        %894 = vmatprep.subr.mxu0 0.0
        %895 = vmatpush2.msra.mxu0 0.0
        %896 = vmatprep.subr.mxu0 0.0
        %897 = vmatpush2.msra.mxu0 0.0
        %898 = vmatprep.subr.mxu0 0.0
        %899 = vmatpush2.msra.mxu0 0.0
        %900 = vmatprep.subr.mxu0 0.0
        %901 = vmatpush2.msra.mxu0 0.0
        %902 = vmatprep.subr.mxu0 0.0
        %903 = vmatpush2.msra.mxu0 0.0
        %904 = vmatprep.subr.mxu0 0.0
        %905 = vmatpush2.msra.mxu0 0.0
        %906 = vmatprep.mubr.f32.mxu0 0.0
        %907 = vmatmul.mubr.f32.gmra.mxu0 %v840
        %v908 = vpop.f32.mrf.mxu0
        %v909 = vadd.f32 %v831, %v908
        %v910 = vpop.f32.mrf.mxu0
        %v911 = vadd.f32 %v835, %v910
        %912 = vdwg.mxu0
        %v913 = vmax.f32 %v909, %v911
        %v914 = vsub.f32 %v909, %v913
        %v915 = vmul.f32 %v914, 1.442695
        %v916 = vpow.pop %v915
        %v917 = vsub.f32 %v911, %v913
        %v918 = vmul.f32 %v917, 1.442695
        %v919 = vpow.pop %v918
        %v920 = vadd.f32 %v916, %v919
        %v921 = vrcp.pop %v920
        %v922 = vmul.f32 1.0, %v921
        %v923 = vmul.f32 %v916, %v922
        %v924 = vmul.f32 %v919, %v922
        %v925 = vld [vmem:[#allocation3] sm:$0xff]
        %v926 = vld [vmem:[#allocation3 + $0x8] sm:$0xff]
        %v927 = vlaneseq
        %v928 = vshrl.u32 %v927, 7
        %v929 = vsub.s32 0, %v928
        %v930 = vrot.slane %v923, %v929
        %v931 = vmul.f32 %v925, %v930
        %v932 = vmul.f32 %v926, %v930
        %v933 = vld [vmem:[%s717] sm:$0xff]
        %v934 = vld [vmem:[%s717 + $0x8] sm:$0xff]
        %v935 = vlaneseq
        %v936 = vshrl.u32 %v935, 7
        %v937 = vsub.s32 0, %v936
        %v938 = vrot.slane %v924, %v937
        %v939 = vmul.f32 %v933, %v938
        %v940 = vmul.f32 %v934, %v938
        %v941 = vadd.f32 %v931, %v939
        %v942 = vadd.f32 %v932, %v940
        %943 = vst [vmem:[%s340] sm:$0xff] %v941
        %944 = vst [vmem:[%s340 + $0x8] sm:$0xff] %v942
        %s945 = sand.u32 %s226, 1
        %s946 = scalar_lea.sflag [#allocation6], %s945
        %s947 = sand.u32 %s226, 1
        %s948 = smul.addr %s947, 16
        %s949 = scalar_lea.vmem [#allocation7], %s948
        // Predicated region
        $region61: #{tpu_custom_call.1} parent=55 // pred_check
          %p950 = pneg %p236
        $region62: #{tpu_custom_call.1} parent=55 // pred_check_branch
          %952 = sbr.rel (%p950) target = $region64
        $region63: #{tpu_custom_call.1} parent=55 // pred_region
          %s954 = ssub.s32 256, 256
          %955 = vsyncadd %s946, %s954
          %s956 = smul.addr %s24, 2
          %s957 = smul.addr %s956, 128
          %s958 = scalar_lea.hbm %s9, %s957
          %s959 = sshll.u32 %s949, 4
          %s960 = int_to_ptr.vmem [resolvable:$true] %s959
          %965 = dma.vmem_to_hbm [thread:$0]  %s960, 256, %s958, %s946, 128, 128, 8
        $region64: #{tpu_custom_call.1} parent=55 // pred_fallthru
          _
      $region56: #{tpu_custom_call.1} parent=5 // pred_fallthru
        _
      %p966 = scmp.le.s32.totalorder 2, %s19
      // Predicated region
      $region65: #{tpu_custom_call.1} parent=5 // pred_check
        %p967 = pneg %p966
      $region66: #{tpu_custom_call.1} parent=5 // pred_check_branch
        %969 = sbr.rel (%p967) target = $region68
      $region67: #{tpu_custom_call.1} parent=5 // pred_region
        %s970 = ssub.s32 %s19, 2
        // Predicated region
        $region69: #{tpu_custom_call.1} parent=67 // pred_check
          %p971 = pneg %p242
        $region70: #{tpu_custom_call.1} parent=67 // pred_check_branch
          %973 = sbr.rel (%p971) target = $region72
        $region71: #{tpu_custom_call.1} parent=67 // pred_region
          %s974 = sand.u32 %s227, 1
          %s975 = scalar_lea.sflag [#allocation6], %s974
          %s976 = sand.u32 %s227, 1
          %s977 = smul.addr %s976, 16
          %s978 = scalar_lea.vmem [#allocation7], %s977
          %979 = dma.done %s975, 256
        $region72: #{tpu_custom_call.1} parent=67 // pred_fallthru
          _
      $region68: #{tpu_custom_call.1} parent=5 // pred_fallthru
        _
    $region6: #{tpu_custom_call.1} parent=1 // loop_footer
      %s23 = sadd.s32 1, %s19
    $region7: #{tpu_custom_call.1} parent=1 // loop_footer_branch
      %18 = sbr.rel target = $region3
    $region8: #{tpu_custom_call.1} parent=1 // loop_exit
      _
    %980 = vsyncpa [#allocation5], 1
    %s981 = scalar_lea.sflag [#allocation5], 1
    %982 = vsyncpa %s981, 1
    %983 = vsyncpa [#allocation6], 1
    %s984 = scalar_lea.sflag [#allocation6], 1
    %985 = vsyncpa %s984, 1

</llo_original>
